<compile_context>
chip_gen: v7x
topology: tpu7x:2x2x1
jax: 0.10.0
libtpu: 0.0.40
codegen_flags: <defaults>
</compile_context>

<pallas_src>
import functools
import math

import jax
import jax.numpy as jnp
from jax import lax
from jax.experimental import pallas as pl
from jax.experimental.pallas import tpu as pltpu


# ---------------------------------------------------------------------------
# Small helpers
# ---------------------------------------------------------------------------

def _layernorm(x, g, b):
    mu = jnp.mean(x, axis=-1, keepdims=True)
    var = jnp.mean((x - mu) ** 2, axis=-1, keepdims=True)
    return (x - mu) * lax.rsqrt(var + 1e-5) * g + b


def _gelu(h):
    # GPT-2 "gelu_new" (tanh approximation).
    # TODO(synk): if the reference GPT2Model uses exact-erf nn.GELU, outputs differ slightly.
    return 0.5 * h * (1.0 + jnp.tanh(0.7978845608028654 * (h + 0.044715 * h * h * h)))


@functools.lru_cache(maxsize=None)
def _vmem_limit_bytes():
    cap = 64 * 1024 * 1024
    try:
        info = pltpu.get_tpu_info()
        cap = int(getattr(info, "vmem_capacity_bytes", cap))
    except Exception:
        pass
    return int(cap * 3 // 4)          # leave headroom below physical VMEM


@functools.lru_cache(maxsize=None)
def _compiler_params():
    return pltpu.CompilerParams(
        dimension_semantics=("parallel",),
        vmem_limit_bytes=_vmem_limit_bytes(),
    )


def _probe_kernel(x_ref, o_ref):
    o_ref[...] = x_ref[...] + 1.0


@functools.lru_cache(maxsize=None)
def _buffered1_supported():
    """Probe whether pipeline_mode=pl.Buffered(1) is accepted on this JAX/TPU."""
    try:
        f = pl.pallas_call(
            _probe_kernel,
            out_shape=jax.ShapeDtypeStruct((8, 128), jnp.float32),
            grid=(1,),
            in_specs=[pl.BlockSpec((8, 128), lambda i: (0, 0),
                                   pipeline_mode=pl.Buffered(1))],
            out_specs=pl.BlockSpec((8, 128), lambda i: (0, 0)),
        )
        jax.block_until_ready(f(jnp.zeros((8, 128), jnp.float32)))
        return True
    except Exception:
        return False


def _const_spec(shape):
    """BlockSpec for an operand whose block index is constant across the grid.

    Single-buffered when supported (resident weights should not be double-buffered);
    falls back to the default pipelining otherwise.
    """
    idx = lambda *args: (0,) * len(shape)
    if _buffered1_supported():
        return pl.BlockSpec(shape, idx, pipeline_mode=pl.Buffered(1))
    return pl.BlockSpec(shape, idx)


# ---------------------------------------------------------------------------
# Kernels
# ---------------------------------------------------------------------------

def _embed_kernel(z_ref, w_ref, b_ref, wpe_ref, o_ref):
    # read_in linear + learned positional embedding, per batch element.
    z = z_ref[0]                                           # [T, d_in] f32
    o_ref[0] = (
        jnp.dot(z, w_ref[...], preferred_element_type=jnp.float32)
        + b_ref[...]
        + wpe_ref[...]
    )


def _layer_kernel(x_ref, ln1g_ref, ln1b_ref, wqkv_ref, bqkv_ref, wproj_ref, bproj_ref,
                  ln2g_ref, ln2b_ref, wfc_ref, bfc_ref, wout_ref, bout_ref,
                  o_ref, acc_ref, *, n_head):
    """Fused transformer layer for one batch element:
    LN1 -> QKV -> causal MHA (all heads) -> proj -> +res -> LN2 -> fc -> GELU -> proj -> +res.
    Attention scale is pre-folded into the Q columns of w_qkv/b_qkv at init.
    """
    x = x_ref[0]                                           # [T, D] f32 (residual stream)
    cdt = wqkv_ref.dtype                                   # MXU operand dtype (bf16)

    # ---------------- attention ----------------
    h = _layernorm(x, ln1g_ref[...], ln1b_ref[...])        # f32 statistics
    qkv = (
        jnp.dot(h.astype(cdt), wqkv_ref[...], preferred_element_type=jnp.float32)
        + bqkv_ref[...]
    )                                                      # [T, 3D] f32 (Q already scaled)

    t, d3 = qkv.shape
    d = d3 // 3
    dh = d // n_head

    row = lax.broadcasted_iota(jnp.int32, (t, t), 0)
    col = lax.broadcasted_iota(jnp.int32, (t, t), 1)
    causal = col <= row

    # TODO(synk): flash-style online-softmax over K/V tiles for large T.
    for hh in range(n_head):                               # unrolled; stays in VMEM
        qh = qkv[:, hh * dh:(hh + 1) * dh]                 # [T, Dh]
        kh = qkv[:, d + hh * dh: d + (hh + 1) * dh]        # [T, Dh]
        vh = qkv[:, 2 * d + hh * dh: 2 * d + (hh + 1) * dh]
        # contract dim 1 of both operands: no explicit k.T materialized.
        s = lax.dot_general(
            qh.astype(cdt), kh.astype(cdt),
            dimension_numbers=(((1,), (1,)), ((), ())),
            preferred_element_type=jnp.float32,
        )                                                  # [T, T] f32, already scaled
        s = jnp.where(causal, s, -1e30)
        s = s - jnp.max(s, axis=-1, keepdims=True)
        p = jnp.exp(s)
        p = p * pl.reciprocal(jnp.sum(p, axis=-1, keepdims=True), approx=True)
        # Write this head's output into the scratch accumulator at its lane offset:
        # bounds live ranges, no concat relayout.
        acc_ref[:, hh * dh:(hh + 1) * dh] = jnp.dot(
            p.astype(cdt), vh.astype(cdt), preferred_element_type=jnp.float32)

    attn_out = (
        jnp.dot(acc_ref[...].astype(cdt), wproj_ref[...],
                preferred_element_type=jnp.float32)
        + bproj_ref[...]
    )
    x = x + attn_out                                       # residual add (f32)

    # ---------------- MLP ----------------
    h2 = _layernorm(x, ln2g_ref[...], ln2b_ref[...])
    h1 = (
        jnp.dot(h2.astype(cdt), wfc_ref[...], preferred_element_type=jnp.float32)
        + bfc_ref[...]
    )                                                      # [T, 4D] f32
    hg = _gelu(h1)
    mlp_out = (
        jnp.dot(hg.astype(cdt), wout_ref[...], preferred_element_type=jnp.float32)
        + bout_ref[...]
    )
    o_ref[0] = x + mlp_out


def _head_kernel(x_ref, g_ref, b_ref, wro_ref, bro_ref, o_ref):
    # Final LayerNorm + read_out expressed as [1,D] x [T,D]^T -> lane-dense [1, T] row
    # (no last-dim-1 output, so stores are full-lane vst, not masked vst.msk).
    x = x_ref[0]                                           # [T, D] f32
    xn = _layernorm(x, g_ref[...], b_ref[...])
    pred = lax.dot_general(
        wro_ref[...], xn,
        dimension_numbers=(((1,), (1,)), ((), ())),
        preferred_element_type=jnp.float32,
    ) + bro_ref[0, 0]                                      # [1, T]
    o_ref[0] = pred


# ---------------------------------------------------------------------------
# pallas_call wrappers
# ---------------------------------------------------------------------------

def embed(zs, w_in, b_in, wpe_t):
    B, T, d_in = zs.shape
    D = w_in.shape[1]
    return pl.pallas_call(
        _embed_kernel,
        out_shape=jax.ShapeDtypeStruct((B, T, D), jnp.float32),
        grid=(B,),
        in_specs=[
            pl.BlockSpec((1, T, d_in), lambda b: (b, 0, 0)),
            _const_spec((d_in, D)),
            _const_spec((1, D)),
            _const_spec((T, D)),
        ],
        out_specs=pl.BlockSpec((1, T, D), lambda b: (b, 0, 0)),
        compiler_params=_compiler_params(),
    )(zs, w_in, b_in, wpe_t)


def layer_block(x, layer, n_head):
    B, T, D = x.shape
    H4 = layer["w_fc"].shape[1]
    kern = functools.partial(_layer_kernel, n_head=n_head)
    # TODO(synk): add a second "parallel" grid axis over query-row tiles when T is
    #             large / B is small so both v7x TensorCores stay busy.
    return pl.pallas_call(
        kern,
        out_shape=jax.ShapeDtypeStruct((B, T, D), jnp.float32),
        grid=(B,),
        in_specs=[
            pl.BlockSpec((1, T, D), lambda b: (b, 0, 0)),   # x (residual input)
            _const_spec((1, D)),                            # ln1_g
            _const_spec((1, D)),                            # ln1_b
            _const_spec((D, 3 * D)),                        # w_qkv (bf16, resident, Q pre-scaled)
            _const_spec((1, 3 * D)),                        # b_qkv
            _const_spec((D, D)),                            # w_proj (bf16, resident)
            _const_spec((1, D)),                            # b_proj
            _const_spec((1, D)),                            # ln2_g
            _const_spec((1, D)),                            # ln2_b
            _const_spec((D, H4)),                           # w_fc (bf16, resident)
            _const_spec((1, H4)),                           # b_fc
            _const_spec((H4, D)),                           # w_out (bf16, resident)
            _const_spec((1, D)),                            # b_out
        ],
        out_specs=pl.BlockSpec((1, T, D), lambda b: (b, 0, 0)),
        scratch_shapes=[pltpu.VMEM((T, D), jnp.float32)],   # per-head output accumulator
        compiler_params=_compiler_params(),
    )(x,
      layer["ln1_g"], layer["ln1_b"],
      layer["w_qkv"], layer["b_qkv"], layer["w_proj"], layer["b_proj"],
      layer["ln2_g"], layer["ln2_b"],
      layer["w_fc"], layer["b_fc"], layer["w_out"], layer["b_out"])


def head_block(x, lnf_g, lnf_b, w_ro, b_ro):
    B, T, D = x.shape
    pred = pl.pallas_call(
        _head_kernel,
        out_shape=jax.ShapeDtypeStruct((B, 1, T), jnp.float32),   # lane-dense output
        grid=(B,),
        in_specs=[
            pl.BlockSpec((1, T, D), lambda b: (b, 0, 0)),
            _const_spec((1, D)),
            _const_spec((1, D)),
            _const_spec((1, D)),          # w_ro as row vector
            _const_spec((1, 1)),
        ],
        out_specs=pl.BlockSpec((1, 1, T), lambda b: (b, 0, 0)),
        compiler_params=_compiler_params(),
    )(x, lnf_g, lnf_b, w_ro, b_ro)
    return pred[:, 0, :]                  # [B, T]


# ---------------------------------------------------------------------------
# Model: parameters + forward
# ---------------------------------------------------------------------------

def init_params(key, n_dims, n_positions, n_embd, n_layer, n_head,
                matmul_dtype=jnp.bfloat16):
    block_size = 2 * n_positions + 1
    d = n_embd
    std = 0.02
    attn_scale = 1.0 / math.sqrt(d // n_head)
    keys = iter(jax.random.split(key, 3 + 4 * n_layer))

    def nrm(shape):
        return std * jax.random.normal(next(keys), shape)

    params = {
        "w_in": nrm((n_dims, d)).astype(jnp.float32),
        "b_in": jnp.zeros((1, d), jnp.float32),
        "wpe": nrm((block_size, d)).astype(jnp.float32),
        "lnf_g": jnp.ones((1, d), jnp.float32),
        "lnf_b": jnp.zeros((1, d), jnp.float32),
        "w_ro": nrm((1, d)).astype(jnp.float32),   # read_out weight (n_embd -> 1), row-major
        "b_ro": jnp.zeros((1, 1), jnp.float32),
        "layers": [],
    }
    for _ in range(n_layer):
        # Pre-fold the attention scale into the Q projection (columns [:d]) so the
        # kernel never multiplies the [T, T] score matrix by `scale`.
        w_qkv = nrm((d, 3 * d))
        w_qkv = w_qkv.at[:, :d].multiply(attn_scale)
        b_qkv = jnp.zeros((1, 3 * d), jnp.float32)
        b_qkv = b_qkv.at[:, :d].multiply(attn_scale)   # no-op for zero bias; kept for generality
        params["layers"].append({
            "ln1_g": jnp.ones((1, d), jnp.float32),
            "ln1_b": jnp.zeros((1, d), jnp.float32),
            "w_qkv": w_qkv.astype(matmul_dtype),
            "b_qkv": b_qkv,
            "w_proj": nrm((d, d)).astype(matmul_dtype),
            "b_proj": jnp.zeros((1, d), jnp.float32),
            "ln2_g": jnp.ones((1, d), jnp.float32),
            "ln2_b": jnp.zeros((1, d), jnp.float32),
            "w_fc": nrm((d, 4 * d)).astype(matmul_dtype),
            "b_fc": jnp.zeros((1, 4 * d), jnp.float32),
            "w_out": nrm((4 * d, d)).astype(matmul_dtype),
            "b_out": jnp.zeros((1, d), jnp.float32),
        })
    return params


def transformer_forward(params, xs, ys, *, n_head):
    """xs: [B, n, d_in], ys: [B, n] -> y: [B, n] (regression head, ind=0, freq=2)."""
    B, n, d_in = xs.shape
    T = 2 * n
    D = params["w_in"].shape[1]

    # _combine: interleave x_i and (y_i padded to d_in) along time -> [B, 2n, d_in]
    ys_wide = jnp.concatenate(
        [ys[..., None], jnp.zeros((B, n, d_in - 1), jnp.float32)], axis=2
    )
    zs = jnp.stack([xs, ys_wide], axis=2).reshape(B, T, d_in)

    # read_in + positional embeddings (rm_pos_embd=False, dropout=0)
    x = embed(zs, params["w_in"], params["b_in"], params["wpe"][:T])

    # One fused kernel per layer: attention + MLP on the resident [T, D] block.
    for layer in params["layers"]:
        x = layer_block(x, layer, n_head)

    pred = head_block(x, params["lnf_g"], params["lnf_b"],
                      params["w_ro"], params["b_ro"])       # [B, T], lane-dense
    # regression head: prediction[:, ind::freq, 0] with ind=0, freq=2
    return pred[:, 0::2]


if __name__ == "__main__":
    # Small, module-consistent shapes
    B, n_positions, n_dims = 2, 8, 4
    n_embd, n_layer, n_head = 32, 2, 4

    key = jax.random.PRNGKey(0)
    k_par, k_xs, k_ys = jax.random.split(key, 3)

    params = init_params(k_par, n_dims, n_positions, n_embd, n_layer, n_head)
    xs = jax.random.normal(k_xs, (B, n_positions, n_dims), dtype=jnp.float32)
    ys = jax.random.normal(k_ys, (B, n_positions), dtype=jnp.float32)

    fwd = jax.jit(functools.partial(transformer_forward, n_head=n_head))
    y = jax.block_until_ready(fwd(params, xs, ys))

    assert y.shape == (B, n_positions), y.shape
    assert bool(jnp.all(jnp.isfinite(y)))
    print("KERNEL_OK")
</pallas_src>

<mosaic_0001>
module attributes {stable_mosaic.version = 11 : i64} {
  func.func @_embed_kernel(%arg0: i32, %arg1: memref<1x16x4xf32, #tpu.memory_space<vmem>>, %arg2: memref<4x32xf32, #tpu.memory_space<vmem>>, %arg3: memref<1x32xf32, #tpu.memory_space<vmem>>, %arg4: memref<16x32xf32, #tpu.memory_space<vmem>>, %arg5: memref<1x16x32xf32, #tpu.memory_space<vmem>>) attributes {dimension_semantics = [#tpu.dimension_semantics<parallel>], iteration_bounds = array<i64: 2>, scalar_prefetch = 0 : i64, scratch_operands = 0 : i64, tpu.core_type = #tpu.core_type<tc>, window_params = [{transform_indices = @transform_0, window_bounds = array<i64: 1, 16, 4>}, {pipeline_mode = #tpu.pipeline_mode<synchronous>, transform_indices = @transform_1, window_bounds = array<i64: 4, 32>}, {pipeline_mode = #tpu.pipeline_mode<synchronous>, transform_indices = @transform_2, window_bounds = array<i64: 1, 32>}, {pipeline_mode = #tpu.pipeline_mode<synchronous>, transform_indices = @transform_3, window_bounds = array<i64: 16, 32>}, {transform_indices = @transform_4, window_bounds = array<i64: 1, 16, 32>}]} {
    %c0 = arith.constant 0 : index
    %c0_0 = arith.constant 0 : index
    %c0_1 = arith.constant 0 : index
    %0 = vector.load %arg1[%c0, %c0_0, %c0_1] : memref<1x16x4xf32, #tpu.memory_space<vmem>>, vector<1x16x4xf32>
    %1 = vector.shape_cast %0 : vector<1x16x4xf32> to vector<16x4xf32>
    %c0_2 = arith.constant 0 : index
    %c0_3 = arith.constant 0 : index
    %2 = vector.load %arg2[%c0_2, %c0_3] : memref<4x32xf32, #tpu.memory_space<vmem>>, vector<4x32xf32>
    %cst = arith.constant dense<0.000000e+00> : vector<16x32xf32>
    %3 = tpu.matmul %1, %2, %cst {dimension_numbers = #tpu.dot_dimension_numbers<[1], [0], [0], [1], [0, 0, 1, 1], [], []>} : vector<16x4xf32>, vector<4x32xf32>, vector<16x32xf32> -> vector<16x32xf32>
    %c0_4 = arith.constant 0 : index
    %c0_5 = arith.constant 0 : index
    %4 = vector.load %arg3[%c0_4, %c0_5] : memref<1x32xf32, #tpu.memory_space<vmem>>, vector<1x32xf32>
    %5 = vector.broadcast %4 : vector<1x32xf32> to vector<16x32xf32>
    %6 = arith.addf %3, %5 : vector<16x32xf32>
    %c0_6 = arith.constant 0 : index
    %c0_7 = arith.constant 0 : index
    %7 = vector.load %arg4[%c0_6, %c0_7] : memref<16x32xf32, #tpu.memory_space<vmem>>, vector<16x32xf32>
    %8 = arith.addf %6, %7 : vector<16x32xf32>
    %c0_8 = arith.constant 0 : index
    %c0_9 = arith.constant 0 : index
    %c0_10 = arith.constant 0 : index
    %9 = vector.load %arg5[%c0_8, %c0_9, %c0_10] : memref<1x16x32xf32, #tpu.memory_space<vmem>>, vector<1x16x32xf32>
    %10 = vector.shape_cast %9 : vector<1x16x32xf32> to vector<16x32xf32>
    %11 = vector.shape_cast %8 : vector<16x32xf32> to vector<1x16x32xf32>
    tpu.vector_store %arg5[%c0_8, %c0_9, %c0_10], %11 {strides = array<i32>} : memref<1x16x32xf32, #tpu.memory_space<vmem>>, vector<1x16x32xf32>,
    return
  }
  func.func @transform_0(%arg0: i32) -> (i32, i32, i32) {
    %c0_i32 = arith.constant 0 : i32
    %c0_i32_0 = arith.constant 0 : i32
    %c0_i32_1 = arith.constant 0 : i32
    return %arg0, %c0_i32, %c0_i32_0 : i32, i32, i32
  }
  func.func @transform_1(%arg0: i32) -> (i32, i32) {
    %c0_i32 = arith.constant 0 : i32
    %c0_i32_0 = arith.constant 0 : i32
    %c0_i32_1 = arith.constant 0 : i32
    return %c0_i32, %c0_i32_0 : i32, i32
  }
  func.func @transform_2(%arg0: i32) -> (i32, i32) {
    %c0_i32 = arith.constant 0 : i32
    %c0_i32_0 = arith.constant 0 : i32
    %c0_i32_1 = arith.constant 0 : i32
    return %c0_i32, %c0_i32_0 : i32, i32
  }
  func.func @transform_3(%arg0: i32) -> (i32, i32) {
    %c0_i32 = arith.constant 0 : i32
    %c0_i32_0 = arith.constant 0 : i32
    %c0_i32_1 = arith.constant 0 : i32
    return %c0_i32, %c0_i32_0 : i32, i32
  }
  func.func @transform_4(%arg0: i32) -> (i32, i32, i32) {
    %c0_i32 = arith.constant 0 : i32
    %c0_i32_0 = arith.constant 0 : i32
    %c0_i32_1 = arith.constant 0 : i32
    return %arg0, %c0_i32, %c0_i32_0 : i32, i32, i32
  }
}

module attributes {stable_mosaic.version = 11 : i64} {
  func.func @_layer_kernel(%arg0: i32, %arg1: memref<1x16x32xf32, #tpu.memory_space<vmem>>, %arg2: memref<1x32xf32, #tpu.memory_space<vmem>>, %arg3: memref<1x32xf32, #tpu.memory_space<vmem>>, %arg4: memref<32x96xbf16, #tpu.memory_space<vmem>>, %arg5: memref<1x96xf32, #tpu.memory_space<vmem>>, %arg6: memref<32x32xbf16, #tpu.memory_space<vmem>>, %arg7: memref<1x32xf32, #tpu.memory_space<vmem>>, %arg8: memref<1x32xf32, #tpu.memory_space<vmem>>, %arg9: memref<1x32xf32, #tpu.memory_space<vmem>>, %arg10: memref<32x128xbf16, #tpu.memory_space<vmem>>, %arg11: memref<1x128xf32, #tpu.memory_space<vmem>>, %arg12: memref<128x32xbf16, #tpu.memory_space<vmem>>, %arg13: memref<1x32xf32, #tpu.memory_space<vmem>>, %arg14: memref<1x16x32xf32, #tpu.memory_space<vmem>>, %arg15: memref<16x32xf32, #tpu.memory_space<vmem>>) attributes {dimension_semantics = [#tpu.dimension_semantics<parallel>], iteration_bounds = array<i64: 2>, scalar_prefetch = 0 : i64, scratch_operands = 1 : i64, tpu.core_type = #tpu.core_type<tc>, window_params = [{transform_indices = @transform_0, window_bounds = array<i64: 1, 16, 32>}, {pipeline_mode = #tpu.pipeline_mode<synchronous>, transform_indices = @transform_1, window_bounds = array<i64: 1, 32>}, {pipeline_mode = #tpu.pipeline_mode<synchronous>, transform_indices = @transform_2, window_bounds = array<i64: 1, 32>}, {pipeline_mode = #tpu.pipeline_mode<synchronous>, transform_indices = @transform_3, window_bounds = array<i64: 32, 96>}, {pipeline_mode = #tpu.pipeline_mode<synchronous>, transform_indices = @transform_4, window_bounds = array<i64: 1, 96>}, {pipeline_mode = #tpu.pipeline_mode<synchronous>, transform_indices = @transform_5, window_bounds = array<i64: 32, 32>}, {pipeline_mode = #tpu.pipeline_mode<synchronous>, transform_indices = @transform_6, window_bounds = array<i64: 1, 32>}, {pipeline_mode = #tpu.pipeline_mode<synchronous>, transform_indices = @transform_7, window_bounds = array<i64: 1, 32>}, {pipeline_mode = #tpu.pipeline_mode<synchronous>, transform_indices = @transform_8, window_bounds = array<i64: 1, 32>}, {pipeline_mode = #tpu.pipeline_mode<synchronous>, transform_indices = @transform_9, window_bounds = array<i64: 32, 128>}, {pipeline_mode = #tpu.pipeline_mode<synchronous>, transform_indices = @transform_10, window_bounds = array<i64: 1, 128>}, {pipeline_mode = #tpu.pipeline_mode<synchronous>, transform_indices = @transform_11, window_bounds = array<i64: 128, 32>}, {pipeline_mode = #tpu.pipeline_mode<synchronous>, transform_indices = @transform_12, window_bounds = array<i64: 1, 32>}, {transform_indices = @transform_13, window_bounds = array<i64: 1, 16, 32>}]} {
    %c0 = arith.constant 0 : index
    %c0_0 = arith.constant 0 : index
    %c0_1 = arith.constant 0 : index
    %0 = vector.load %arg1[%c0, %c0_0, %c0_1] : memref<1x16x32xf32, #tpu.memory_space<vmem>>, vector<1x16x32xf32>
    %1 = vector.shape_cast %0 : vector<1x16x32xf32> to vector<16x32xf32>
    %c0_2 = arith.constant 0 : index
    %c0_3 = arith.constant 0 : index
    %2 = vector.load %arg2[%c0_2, %c0_3] : memref<1x32xf32, #tpu.memory_space<vmem>>, vector<1x32xf32>
    %c0_4 = arith.constant 0 : index
    %c0_5 = arith.constant 0 : index
    %3 = vector.load %arg3[%c0_4, %c0_5] : memref<1x32xf32, #tpu.memory_space<vmem>>, vector<1x32xf32>
    %cst = arith.constant dense<0.000000e+00> : vector<16xf32>
    %4 = vector.multi_reduction <add>, %1, %cst [1] : vector<16x32xf32> to vector<16xf32>
    %5 = vector.shape_cast %4 : vector<16xf32> to vector<16x1xf32>
    %cst_6 = arith.constant 3.200000e+01 : f32
    %6 = vector.broadcast %cst_6 : f32 to vector<16x1xf32>
    %7 = arith.divf %5, %6 : vector<16x1xf32>
    %8 = vector.broadcast %7 : vector<16x1xf32> to vector<16x32xf32>
    %9 = arith.subf %1, %8 : vector<16x32xf32>
    %10 = arith.mulf %9, %9 : vector<16x32xf32>
    %cst_7 = arith.constant dense<0.000000e+00> : vector<16xf32>
    %11 = vector.multi_reduction <add>, %10, %cst_7 [1] : vector<16x32xf32> to vector<16xf32>
    %12 = vector.shape_cast %11 : vector<16xf32> to vector<16x1xf32>
    %cst_8 = arith.constant 3.200000e+01 : f32
    %13 = vector.broadcast %cst_8 : f32 to vector<16x1xf32>
    %14 = arith.divf %12, %13 : vector<16x1xf32>
    %15 = vector.broadcast %7 : vector<16x1xf32> to vector<16x32xf32>
    %16 = arith.subf %1, %15 : vector<16x32xf32>
    %cst_9 = arith.constant 9.99999974E-6 : f32
    %17 = vector.broadcast %cst_9 : f32 to vector<16x1xf32>
    %18 = arith.addf %14, %17 : vector<16x1xf32>
    %19 = math.rsqrt %18 : vector<16x1xf32>
    %20 = vector.broadcast %19 : vector<16x1xf32> to vector<16x32xf32>
    %21 = arith.mulf %16, %20 : vector<16x32xf32>
    %22 = vector.broadcast %2 : vector<1x32xf32> to vector<16x32xf32>
    %23 = arith.mulf %21, %22 : vector<16x32xf32>
    %24 = vector.broadcast %3 : vector<1x32xf32> to vector<16x32xf32>
    %25 = arith.addf %23, %24 : vector<16x32xf32>
    %26 = arith.truncf %25 : vector<16x32xf32> to vector<16x32xbf16>
    %c0_10 = arith.constant 0 : index
    %c0_11 = arith.constant 0 : index
    %27 = vector.load %arg4[%c0_10, %c0_11] : memref<32x96xbf16, #tpu.memory_space<vmem>>, vector<32x96xbf16>
    %cst_12 = arith.constant dense<0.000000e+00> : vector<16x96xf32>
    %28 = tpu.matmul %26, %27, %cst_12 {dimension_numbers = #tpu.dot_dimension_numbers<[1], [0], [0], [1], [0, 0, 1, 1], [], []>} : vector<16x32xbf16>, vector<32x96xbf16>, vector<16x96xf32> -> vector<16x96xf32>
    %c0_13 = arith.constant 0 : index
    %c0_14 = arith.constant 0 : index
    %29 = vector.load %arg5[%c0_13, %c0_14] : memref<1x96xf32, #tpu.memory_space<vmem>>, vector<1x96xf32>
    %30 = vector.broadcast %29 : vector<1x96xf32> to vector<16x96xf32>
    %31 = arith.addf %28, %30 : vector<16x96xf32>
    %32 = tpu.iota {dimensions = array<i32: 0>} : vector<16x16xi32>
    %33 = tpu.iota {dimensions = array<i32: 1>} : vector<16x16xi32>
    %34 = arith.cmpi sle, %33, %32 : vector<16x16xi32>
    %35 = vector.extract_strided_slice %31 {offsets = [0, 0], sizes = [16, 8], strides = [1, 1]} : vector<16x96xf32> to vector<16x8xf32>
    %36 = vector.extract_strided_slice %31 {offsets = [0, 32], sizes = [16, 8], strides = [1, 1]} : vector<16x96xf32> to vector<16x8xf32>
    %37 = vector.extract_strided_slice %31 {offsets = [0, 64], sizes = [16, 8], strides = [1, 1]} : vector<16x96xf32> to vector<16x8xf32>
    %38 = arith.truncf %35 : vector<16x8xf32> to vector<16x8xbf16>
    %39 = arith.truncf %36 : vector<16x8xf32> to vector<16x8xbf16>
    %cst_15 = arith.constant dense<0.000000e+00> : vector<16x16xf32>
    %40 = tpu.matmul %38, %39, %cst_15 {dimension_numbers = #tpu.dot_dimension_numbers<[1], [1], [0], [0], [0, 0, 1, 0], [], []>} : vector<16x8xbf16>, vector<16x8xbf16>, vector<16x16xf32> -> vector<16x16xf32>
    %cst_16 = arith.constant -1.000000e+30 : f32
    %41 = vector.broadcast %cst_16 : f32 to vector<16x16xf32>
    %42 = arith.select %34, %40, %41 : vector<16x16xi1>, vector<16x16xf32>
    %cst_17 = arith.constant dense<0xFF800000> : vector<16xf32>
    %43 = vector.multi_reduction <maximumf>, %42, %cst_17 [1] : vector<16x16xf32> to vector<16xf32>
    %44 = vector.shape_cast %43 : vector<16xf32> to vector<16x1xf32>
    %45 = vector.broadcast %44 : vector<16x1xf32> to vector<16x16xf32>
    %46 = arith.subf %42, %45 : vector<16x16xf32>
    %47 = math.exp %46 : vector<16x16xf32>
    %cst_18 = arith.constant dense<0.000000e+00> : vector<16xf32>
    %48 = vector.multi_reduction <add>, %47, %cst_18 [1] : vector<16x16xf32> to vector<16xf32>
    %49 = vector.shape_cast %48 : vector<16xf32> to vector<16x1xf32>
    %50 = tpu.reciprocal %49 {approx = true} : vector<16x1xf32> -> vector<16x1xf32>
    %51 = vector.broadcast %50 : vector<16x1xf32> to vector<16x16xf32>
    %52 = arith.mulf %47, %51 : vector<16x16xf32>
    %53 = arith.truncf %52 : vector<16x16xf32> to vector<16x16xbf16>
    %54 = arith.truncf %37 : vector<16x8xf32> to vector<16x8xbf16>
    %cst_19 = arith.constant dense<0.000000e+00> : vector<16x8xf32>
    %55 = tpu.matmul %53, %54, %cst_19 {dimension_numbers = #tpu.dot_dimension_numbers<[1], [0], [0], [1], [0, 0, 1, 1], [], []>} : vector<16x16xbf16>, vector<16x8xbf16>, vector<16x8xf32> -> vector<16x8xf32>
    %c0_20 = arith.constant 0 : index
    %c0_21 = arith.constant 0 : index
    %56 = vector.load %arg15[%c0_20, %c0_21] : memref<16x32xf32, #tpu.memory_space<vmem>>, vector<16x8xf32>
    tpu.vector_store %arg15[%c0_20, %c0_21], %55 {strides = array<i32>} : memref<16x32xf32, #tpu.memory_space<vmem>>, vector<16x8xf32>,
    %57 = vector.extract_strided_slice %31 {offsets = [0, 8], sizes = [16, 8], strides = [1, 1]} : vector<16x96xf32> to vector<16x8xf32>
    %58 = vector.extract_strided_slice %31 {offsets = [0, 40], sizes = [16, 8], strides = [1, 1]} : vector<16x96xf32> to vector<16x8xf32>
    %59 = vector.extract_strided_slice %31 {offsets = [0, 72], sizes = [16, 8], strides = [1, 1]} : vector<16x96xf32> to vector<16x8xf32>
    %60 = arith.truncf %57 : vector<16x8xf32> to vector<16x8xbf16>
    %61 = arith.truncf %58 : vector<16x8xf32> to vector<16x8xbf16>
    %cst_22 = arith.constant dense<0.000000e+00> : vector<16x16xf32>
    %62 = tpu.matmul %60, %61, %cst_22 {dimension_numbers = #tpu.dot_dimension_numbers<[1], [1], [0], [0], [0, 0, 1, 0], [], []>} : vector<16x8xbf16>, vector<16x8xbf16>, vector<16x16xf32> -> vector<16x16xf32>
    %cst_23 = arith.constant -1.000000e+30 : f32
    %63 = vector.broadcast %cst_23 : f32 to vector<16x16xf32>
    %64 = arith.select %34, %62, %63 : vector<16x16xi1>, vector<16x16xf32>
    %cst_24 = arith.constant dense<0xFF800000> : vector<16xf32>
    %65 = vector.multi_reduction <maximumf>, %64, %cst_24 [1] : vector<16x16xf32> to vector<16xf32>
    %66 = vector.shape_cast %65 : vector<16xf32> to vector<16x1xf32>
    %67 = vector.broadcast %66 : vector<16x1xf32> to vector<16x16xf32>
    %68 = arith.subf %64, %67 : vector<16x16xf32>
    %69 = math.exp %68 : vector<16x16xf32>
    %cst_25 = arith.constant dense<0.000000e+00> : vector<16xf32>
    %70 = vector.multi_reduction <add>, %69, %cst_25 [1] : vector<16x16xf32> to vector<16xf32>
    %71 = vector.shape_cast %70 : vector<16xf32> to vector<16x1xf32>
    %72 = tpu.reciprocal %71 {approx = true} : vector<16x1xf32> -> vector<16x1xf32>
    %73 = vector.broadcast %72 : vector<16x1xf32> to vector<16x16xf32>
    %74 = arith.mulf %69, %73 : vector<16x16xf32>
    %75 = arith.truncf %74 : vector<16x16xf32> to vector<16x16xbf16>
    %76 = arith.truncf %59 : vector<16x8xf32> to vector<16x8xbf16>
    %cst_26 = arith.constant dense<0.000000e+00> : vector<16x8xf32>
    %77 = tpu.matmul %75, %76, %cst_26 {dimension_numbers = #tpu.dot_dimension_numbers<[1], [0], [0], [1], [0, 0, 1, 1], [], []>} : vector<16x16xbf16>, vector<16x8xbf16>, vector<16x8xf32> -> vector<16x8xf32>
    %c0_27 = arith.constant 0 : index
    %c8 = arith.constant 8 : index
    %78 = vector.load %arg15[%c0_27, %c8] : memref<16x32xf32, #tpu.memory_space<vmem>>, vector<16x8xf32>
    tpu.vector_store %arg15[%c0_27, %c8], %77 {strides = array<i32>} : memref<16x32xf32, #tpu.memory_space<vmem>>, vector<16x8xf32>,
    %79 = vector.extract_strided_slice %31 {offsets = [0, 16], sizes = [16, 8], strides = [1, 1]} : vector<16x96xf32> to vector<16x8xf32>
    %80 = vector.extract_strided_slice %31 {offsets = [0, 48], sizes = [16, 8], strides = [1, 1]} : vector<16x96xf32> to vector<16x8xf32>
    %81 = vector.extract_strided_slice %31 {offsets = [0, 80], sizes = [16, 8], strides = [1, 1]} : vector<16x96xf32> to vector<16x8xf32>
    %82 = arith.truncf %79 : vector<16x8xf32> to vector<16x8xbf16>
    %83 = arith.truncf %80 : vector<16x8xf32> to vector<16x8xbf16>
    %cst_28 = arith.constant dense<0.000000e+00> : vector<16x16xf32>
    %84 = tpu.matmul %82, %83, %cst_28 {dimension_numbers = #tpu.dot_dimension_numbers<[1], [1], [0], [0], [0, 0, 1, 0], [], []>} : vector<16x8xbf16>, vector<16x8xbf16>, vector<16x16xf32> -> vector<16x16xf32>
    %cst_29 = arith.constant -1.000000e+30 : f32
    %85 = vector.broadcast %cst_29 : f32 to vector<16x16xf32>
    %86 = arith.select %34, %84, %85 : vector<16x16xi1>, vector<16x16xf32>
    %cst_30 = arith.constant dense<0xFF800000> : vector<16xf32>
    %87 = vector.multi_reduction <maximumf>, %86, %cst_30 [1] : vector<16x16xf32> to vector<16xf32>
    %88 = vector.shape_cast %87 : vector<16xf32> to vector<16x1xf32>
    %89 = vector.broadcast %88 : vector<16x1xf32> to vector<16x16xf32>
    %90 = arith.subf %86, %89 : vector<16x16xf32>
    %91 = math.exp %90 : vector<16x16xf32>
    %cst_31 = arith.constant dense<0.000000e+00> : vector<16xf32>
    %92 = vector.multi_reduction <add>, %91, %cst_31 [1] : vector<16x16xf32> to vector<16xf32>
    %93 = vector.shape_cast %92 : vector<16xf32> to vector<16x1xf32>
    %94 = tpu.reciprocal %93 {approx = true} : vector<16x1xf32> -> vector<16x1xf32>
    %95 = vector.broadcast %94 : vector<16x1xf32> to vector<16x16xf32>
    %96 = arith.mulf %91, %95 : vector<16x16xf32>
    %97 = arith.truncf %96 : vector<16x16xf32> to vector<16x16xbf16>
    %98 = arith.truncf %81 : vector<16x8xf32> to vector<16x8xbf16>
    %cst_32 = arith.constant dense<0.000000e+00> : vector<16x8xf32>
    %99 = tpu.matmul %97, %98, %cst_32 {dimension_numbers = #tpu.dot_dimension_numbers<[1], [0], [0], [1], [0, 0, 1, 1], [], []>} : vector<16x16xbf16>, vector<16x8xbf16>, vector<16x8xf32> -> vector<16x8xf32>
    %c0_33 = arith.constant 0 : index
    %c16 = arith.constant 16 : index
    %100 = vector.load %arg15[%c0_33, %c16] : memref<16x32xf32, #tpu.memory_space<vmem>>, vector<16x8xf32>
    tpu.vector_store %arg15[%c0_33, %c16], %99 {strides = array<i32>} : memref<16x32xf32, #tpu.memory_space<vmem>>, vector<16x8xf32>,
    %101 = vector.extract_strided_slice %31 {offsets = [0, 24], sizes = [16, 8], strides = [1, 1]} : vector<16x96xf32> to vector<16x8xf32>
    %102 = vector.extract_strided_slice %31 {offsets = [0, 56], sizes = [16, 8], strides = [1, 1]} : vector<16x96xf32> to vector<16x8xf32>
    %103 = vector.extract_strided_slice %31 {offsets = [0, 88], sizes = [16, 8], strides = [1, 1]} : vector<16x96xf32> to vector<16x8xf32>
    %104 = arith.truncf %101 : vector<16x8xf32> to vector<16x8xbf16>
    %105 = arith.truncf %102 : vector<16x8xf32> to vector<16x8xbf16>
    %cst_34 = arith.constant dense<0.000000e+00> : vector<16x16xf32>
    %106 = tpu.matmul %104, %105, %cst_34 {dimension_numbers = #tpu.dot_dimension_numbers<[1], [1], [0], [0], [0, 0, 1, 0], [], []>} : vector<16x8xbf16>, vector<16x8xbf16>, vector<16x16xf32> -> vector<16x16xf32>
    %cst_35 = arith.constant -1.000000e+30 : f32
    %107 = vector.broadcast %cst_35 : f32 to vector<16x16xf32>
    %108 = arith.select %34, %106, %107 : vector<16x16xi1>, vector<16x16xf32>
    %cst_36 = arith.constant dense<0xFF800000> : vector<16xf32>
    %109 = vector.multi_reduction <maximumf>, %108, %cst_36 [1] : vector<16x16xf32> to vector<16xf32>
    %110 = vector.shape_cast %109 : vector<16xf32> to vector<16x1xf32>
    %111 = vector.broadcast %110 : vector<16x1xf32> to vector<16x16xf32>
    %112 = arith.subf %108, %111 : vector<16x16xf32>
    %113 = math.exp %112 : vector<16x16xf32>
    %cst_37 = arith.constant dense<0.000000e+00> : vector<16xf32>
    %114 = vector.multi_reduction <add>, %113, %cst_37 [1] : vector<16x16xf32> to vector<16xf32>
    %115 = vector.shape_cast %114 : vector<16xf32> to vector<16x1xf32>
    %116 = tpu.reciprocal %115 {approx = true} : vector<16x1xf32> -> vector<16x1xf32>
    %117 = vector.broadcast %116 : vector<16x1xf32> to vector<16x16xf32>
    %118 = arith.mulf %113, %117 : vector<16x16xf32>
    %119 = arith.truncf %118 : vector<16x16xf32> to vector<16x16xbf16>
    %120 = arith.truncf %103 : vector<16x8xf32> to vector<16x8xbf16>
    %cst_38 = arith.constant dense<0.000000e+00> : vector<16x8xf32>
    %121 = tpu.matmul %119, %120, %cst_38 {dimension_numbers = #tpu.dot_dimension_numbers<[1], [0], [0], [1], [0, 0, 1, 1], [], []>} : vector<16x16xbf16>, vector<16x8xbf16>, vector<16x8xf32> -> vector<16x8xf32>
    %c0_39 = arith.constant 0 : index
    %c24 = arith.constant 24 : index
    %122 = vector.load %arg15[%c0_39, %c24] : memref<16x32xf32, #tpu.memory_space<vmem>>, vector<16x8xf32>
    tpu.vector_store %arg15[%c0_39, %c24], %121 {strides = array<i32>} : memref<16x32xf32, #tpu.memory_space<vmem>>, vector<16x8xf32>,
    %c0_40 = arith.constant 0 : index
    %c0_41 = arith.constant 0 : index
    %123 = vector.load %arg15[%c0_40, %c0_41] : memref<16x32xf32, #tpu.memory_space<vmem>>, vector<16x32xf32>
    %124 = arith.truncf %123 : vector<16x32xf32> to vector<16x32xbf16>
    %c0_42 = arith.constant 0 : index
    %c0_43 = arith.constant 0 : index
    %125 = vector.load %arg6[%c0_42, %c0_43] : memref<32x32xbf16, #tpu.memory_space<vmem>>, vector<32x32xbf16>
    %cst_44 = arith.constant dense<0.000000e+00> : vector<16x32xf32>
    %126 = tpu.matmul %124, %125, %cst_44 {dimension_numbers = #tpu.dot_dimension_numbers<[1], [0], [0], [1], [0, 0, 1, 1], [], []>} : vector<16x32xbf16>, vector<32x32xbf16>, vector<16x32xf32> -> vector<16x32xf32>
    %c0_45 = arith.constant 0 : index
    %c0_46 = arith.constant 0 : index
    %127 = vector.load %arg7[%c0_45, %c0_46] : memref<1x32xf32, #tpu.memory_space<vmem>>, vector<1x32xf32>
    %128 = vector.broadcast %127 : vector<1x32xf32> to vector<16x32xf32>
    %129 = arith.addf %126, %128 : vector<16x32xf32>
    %130 = arith.addf %1, %129 : vector<16x32xf32>
    %c0_47 = arith.constant 0 : index
    %c0_48 = arith.constant 0 : index
    %131 = vector.load %arg8[%c0_47, %c0_48] : memref<1x32xf32, #tpu.memory_space<vmem>>, vector<1x32xf32>
    %c0_49 = arith.constant 0 : index
    %c0_50 = arith.constant 0 : index
    %132 = vector.load %arg9[%c0_49, %c0_50] : memref<1x32xf32, #tpu.memory_space<vmem>>, vector<1x32xf32>
    %cst_51 = arith.constant dense<0.000000e+00> : vector<16xf32>
    %133 = vector.multi_reduction <add>, %130, %cst_51 [1] : vector<16x32xf32> to vector<16xf32>
    %134 = vector.shape_cast %133 : vector<16xf32> to vector<16x1xf32>
    %cst_52 = arith.constant 3.200000e+01 : f32
    %135 = vector.broadcast %cst_52 : f32 to vector<16x1xf32>
    %136 = arith.divf %134, %135 : vector<16x1xf32>
    %137 = vector.broadcast %136 : vector<16x1xf32> to vector<16x32xf32>
    %138 = arith.subf %130, %137 : vector<16x32xf32>
    %139 = arith.mulf %138, %138 : vector<16x32xf32>
    %cst_53 = arith.constant dense<0.000000e+00> : vector<16xf32>
    %140 = vector.multi_reduction <add>, %139, %cst_53 [1] : vector<16x32xf32> to vector<16xf32>
    %141 = vector.shape_cast %140 : vector<16xf32> to vector<16x1xf32>
    %cst_54 = arith.constant 3.200000e+01 : f32
    %142 = vector.broadcast %cst_54 : f32 to vector<16x1xf32>
    %143 = arith.divf %141, %142 : vector<16x1xf32>
    %144 = vector.broadcast %136 : vector<16x1xf32> to vector<16x32xf32>
    %145 = arith.subf %130, %144 : vector<16x32xf32>
    %cst_55 = arith.constant 9.99999974E-6 : f32
    %146 = vector.broadcast %cst_55 : f32 to vector<16x1xf32>
    %147 = arith.addf %143, %146 : vector<16x1xf32>
    %148 = math.rsqrt %147 : vector<16x1xf32>
    %149 = vector.broadcast %148 : vector<16x1xf32> to vector<16x32xf32>
    %150 = arith.mulf %145, %149 : vector<16x32xf32>
    %151 = vector.broadcast %131 : vector<1x32xf32> to vector<16x32xf32>
    %152 = arith.mulf %150, %151 : vector<16x32xf32>
    %153 = vector.broadcast %132 : vector<1x32xf32> to vector<16x32xf32>
    %154 = arith.addf %152, %153 : vector<16x32xf32>
    %155 = arith.truncf %154 : vector<16x32xf32> to vector<16x32xbf16>
    %c0_56 = arith.constant 0 : index
    %c0_57 = arith.constant 0 : index
    %156 = vector.load %arg10[%c0_56, %c0_57] : memref<32x128xbf16, #tpu.memory_space<vmem>>, vector<32x128xbf16>
    %cst_58 = arith.constant dense<0.000000e+00> : vector<16x128xf32>
    %157 = tpu.matmul %155, %156, %cst_58 {dimension_numbers = #tpu.dot_dimension_numbers<[1], [0], [0], [1], [0, 0, 1, 1], [], []>} : vector<16x32xbf16>, vector<32x128xbf16>, vector<16x128xf32> -> vector<16x128xf32>
    %c0_59 = arith.constant 0 : index
    %c0_60 = arith.constant 0 : index
    %158 = vector.load %arg11[%c0_59, %c0_60] : memref<1x128xf32, #tpu.memory_space<vmem>>, vector<1x128xf32>
    %159 = vector.broadcast %158 : vector<1x128xf32> to vector<16x128xf32>
    %160 = arith.addf %157, %159 : vector<16x128xf32>
    %cst_61 = arith.constant 5.000000e-01 : f32
    %161 = vector.broadcast %cst_61 : f32 to vector<16x128xf32>
    %162 = arith.mulf %161, %160 : vector<16x128xf32>
    %cst_62 = arith.constant 4.471500e-02 : f32
    %163 = vector.broadcast %cst_62 : f32 to vector<16x128xf32>
    %164 = arith.mulf %163, %160 : vector<16x128xf32>
    %165 = arith.mulf %164, %160 : vector<16x128xf32>
    %166 = arith.mulf %165, %160 : vector<16x128xf32>
    %167 = arith.addf %160, %166 : vector<16x128xf32>
    %cst_63 = arith.constant 0.797884583 : f32
    %168 = vector.broadcast %cst_63 : f32 to vector<16x128xf32>
    %169 = arith.mulf %168, %167 : vector<16x128xf32>
    %170 = math.tanh %169 : vector<16x128xf32>
    %cst_64 = arith.constant 1.000000e+00 : f32
    %171 = vector.broadcast %cst_64 : f32 to vector<16x128xf32>
    %172 = arith.addf %171, %170 : vector<16x128xf32>
    %173 = arith.mulf %162, %172 : vector<16x128xf32>
    %174 = arith.truncf %173 : vector<16x128xf32> to vector<16x128xbf16>
    %c0_65 = arith.constant 0 : index
    %c0_66 = arith.constant 0 : index
    %175 = vector.load %arg12[%c0_65, %c0_66] : memref<128x32xbf16, #tpu.memory_space<vmem>>, vector<128x32xbf16>
    %cst_67 = arith.constant dense<0.000000e+00> : vector<16x32xf32>
    %176 = tpu.matmul %174, %175, %cst_67 {dimension_numbers = #tpu.dot_dimension_numbers<[1], [0], [0], [1], [0, 0, 1, 1], [], []>} : vector<16x128xbf16>, vector<128x32xbf16>, vector<16x32xf32> -> vector<16x32xf32>
    %c0_68 = arith.constant 0 : index
    %c0_69 = arith.constant 0 : index
    %177 = vector.load %arg13[%c0_68, %c0_69] : memref<1x32xf32, #tpu.memory_space<vmem>>, vector<1x32xf32>
    %178 = vector.broadcast %177 : vector<1x32xf32> to vector<16x32xf32>
    %179 = arith.addf %176, %178 : vector<16x32xf32>
    %180 = arith.addf %130, %179 : vector<16x32xf32>
    %c0_70 = arith.constant 0 : index
    %c0_71 = arith.constant 0 : index
    %c0_72 = arith.constant 0 : index
    %181 = vector.load %arg14[%c0_70, %c0_71, %c0_72] : memref<1x16x32xf32, #tpu.memory_space<vmem>>, vector<1x16x32xf32>
    %182 = vector.shape_cast %181 : vector<1x16x32xf32> to vector<16x32xf32>
    %183 = vector.shape_cast %180 : vector<16x32xf32> to vector<1x16x32xf32>
    tpu.vector_store %arg14[%c0_70, %c0_71, %c0_72], %183 {strides = array<i32>} : memref<1x16x32xf32, #tpu.memory_space<vmem>>, vector<1x16x32xf32>,
    return
  }
  func.func @transform_0(%arg0: i32) -> (i32, i32, i32) {
    %c0_i32 = arith.constant 0 : i32
    %c0_i32_0 = arith.constant 0 : i32
    %c0_i32_1 = arith.constant 0 : i32
    return %arg0, %c0_i32, %c0_i32_0 : i32, i32, i32
  }
  func.func @transform_1(%arg0: i32) -> (i32, i32) {
    %c0_i32 = arith.constant 0 : i32
    %c0_i32_0 = arith.constant 0 : i32
    %c0_i32_1 = arith.constant 0 : i32
    return %c0_i32, %c0_i32_0 : i32, i32
  }
  func.func @transform_2(%arg0: i32) -> (i32, i32) {
    %c0_i32 = arith.constant 0 : i32
    %c0_i32_0 = arith.constant 0 : i32
    %c0_i32_1 = arith.constant 0 : i32
    return %c0_i32, %c0_i32_0 : i32, i32
  }
  func.func @transform_3(%arg0: i32) -> (i32, i32) {
    %c0_i32 = arith.constant 0 : i32
    %c0_i32_0 = arith.constant 0 : i32
    %c0_i32_1 = arith.constant 0 : i32
    return %c0_i32, %c0_i32_0 : i32, i32
  }
  func.func @transform_4(%arg0: i32) -> (i32, i32) {
    %c0_i32 = arith.constant 0 : i32
    %c0_i32_0 = arith.constant 0 : i32
    %c0_i32_1 = arith.constant 0 : i32
    return %c0_i32, %c0_i32_0 : i32, i32
  }
  func.func @transform_5(%arg0: i32) -> (i32, i32) {
    %c0_i32 = arith.constant 0 : i32
    %c0_i32_0 = arith.constant 0 : i32
    %c0_i32_1 = arith.constant 0 : i32
    return %c0_i32, %c0_i32_0 : i32, i32
  }
  func.func @transform_6(%arg0: i32) -> (i32, i32) {
    %c0_i32 = arith.constant 0 : i32
    %c0_i32_0 = arith.constant 0 : i32
    %c0_i32_1 = arith.constant 0 : i32
    return %c0_i32, %c0_i32_0 : i32, i32
  }
  func.func @transform_7(%arg0: i32) -> (i32, i32) {
    %c0_i32 = arith.constant 0 : i32
    %c0_i32_0 = arith.constant 0 : i32
    %c0_i32_1 = arith.constant 0 : i32
    return %c0_i32, %c0_i32_0 : i32, i32
  }
  func.func @transform_8(%arg0: i32) -> (i32, i32) {
    %c0_i32 = arith.constant 0 : i32
    %c0_i32_0 = arith.constant 0 : i32
    %c0_i32_1 = arith.constant 0 : i32
    return %c0_i32, %c0_i32_0 : i32, i32
  }
  func.func @transform_9(%arg0: i32) -> (i32, i32) {
    %c0_i32 = arith.constant 0 : i32
    %c0_i32_0 = arith.constant 0 : i32
    %c0_i32_1 = arith.constant 0 : i32
    return %c0_i32, %c0_i32_0 : i32, i32
  }
  func.func @transform_10(%arg0: i32) -> (i32, i32) {
    %c0_i32 = arith.constant 0 : i32
    %c0_i32_0 = arith.constant 0 : i32
    %c0_i32_1 = arith.constant 0 : i32
    return %c0_i32, %c0_i32_0 : i32, i32
  }
  func.func @transform_11(%arg0: i32) -> (i32, i32) {
    %c0_i32 = arith.constant 0 : i32
    %c0_i32_0 = arith.constant 0 : i32
    %c0_i32_1 = arith.constant 0 : i32
    return %c0_i32, %c0_i32_0 : i32, i32
  }
  func.func @transform_12(%arg0: i32) -> (i32, i32) {
    %c0_i32 = arith.constant 0 : i32
    %c0_i32_0 = arith.constant 0 : i32
    %c0_i32_1 = arith.constant 0 : i32
    return %c0_i32, %c0_i32_0 : i32, i32
  }
  func.func @transform_13(%arg0: i32) -> (i32, i32, i32) {
    %c0_i32 = arith.constant 0 : i32
    %c0_i32_0 = arith.constant 0 : i32
    %c0_i32_1 = arith.constant 0 : i32
    return %arg0, %c0_i32, %c0_i32_0 : i32, i32, i32
  }
}

module attributes {stable_mosaic.version = 11 : i64} {
  func.func @_head_kernel(%arg0: i32, %arg1: memref<1x16x32xf32, #tpu.memory_space<vmem>>, %arg2: memref<1x32xf32, #tpu.memory_space<vmem>>, %arg3: memref<1x32xf32, #tpu.memory_space<vmem>>, %arg4: memref<1x32xf32, #tpu.memory_space<vmem>>, %arg5: memref<1x1xf32, #tpu.memory_space<vmem>>, %arg6: memref<1x1x16xf32, #tpu.memory_space<vmem>>) attributes {dimension_semantics = [#tpu.dimension_semantics<parallel>], iteration_bounds = array<i64: 2>, scalar_prefetch = 0 : i64, scratch_operands = 0 : i64, tpu.core_type = #tpu.core_type<tc>, window_params = [{transform_indices = @transform_0, window_bounds = array<i64: 1, 16, 32>}, {pipeline_mode = #tpu.pipeline_mode<synchronous>, transform_indices = @transform_1, window_bounds = array<i64: 1, 32>}, {pipeline_mode = #tpu.pipeline_mode<synchronous>, transform_indices = @transform_2, window_bounds = array<i64: 1, 32>}, {pipeline_mode = #tpu.pipeline_mode<synchronous>, transform_indices = @transform_3, window_bounds = array<i64: 1, 32>}, {pipeline_mode = #tpu.pipeline_mode<synchronous>, transform_indices = @transform_4, window_bounds = array<i64: 1, 1>}, {transform_indices = @transform_5, window_bounds = array<i64: 1, 1, 16>}]} {
    %c0 = arith.constant 0 : index
    %c0_0 = arith.constant 0 : index
    %c0_1 = arith.constant 0 : index
    %0 = vector.load %arg1[%c0, %c0_0, %c0_1] : memref<1x16x32xf32, #tpu.memory_space<vmem>>, vector<1x16x32xf32>
    %1 = vector.shape_cast %0 : vector<1x16x32xf32> to vector<16x32xf32>
    %c0_2 = arith.constant 0 : index
    %c0_3 = arith.constant 0 : index
    %2 = vector.load %arg2[%c0_2, %c0_3] : memref<1x32xf32, #tpu.memory_space<vmem>>, vector<1x32xf32>
    %c0_4 = arith.constant 0 : index
    %c0_5 = arith.constant 0 : index
    %3 = vector.load %arg3[%c0_4, %c0_5] : memref<1x32xf32, #tpu.memory_space<vmem>>, vector<1x32xf32>
    %cst = arith.constant dense<0.000000e+00> : vector<16xf32>
    %4 = vector.multi_reduction <add>, %1, %cst [1] : vector<16x32xf32> to vector<16xf32>
    %5 = vector.shape_cast %4 : vector<16xf32> to vector<16x1xf32>
    %cst_6 = arith.constant 3.200000e+01 : f32
    %6 = vector.broadcast %cst_6 : f32 to vector<16x1xf32>
    %7 = arith.divf %5, %6 : vector<16x1xf32>
    %8 = vector.broadcast %7 : vector<16x1xf32> to vector<16x32xf32>
    %9 = arith.subf %1, %8 : vector<16x32xf32>
    %10 = arith.mulf %9, %9 : vector<16x32xf32>
    %cst_7 = arith.constant dense<0.000000e+00> : vector<16xf32>
    %11 = vector.multi_reduction <add>, %10, %cst_7 [1] : vector<16x32xf32> to vector<16xf32>
    %12 = vector.shape_cast %11 : vector<16xf32> to vector<16x1xf32>
    %cst_8 = arith.constant 3.200000e+01 : f32
    %13 = vector.broadcast %cst_8 : f32 to vector<16x1xf32>
    %14 = arith.divf %12, %13 : vector<16x1xf32>
    %15 = vector.broadcast %7 : vector<16x1xf32> to vector<16x32xf32>
    %16 = arith.subf %1, %15 : vector<16x32xf32>
    %cst_9 = arith.constant 9.99999974E-6 : f32
    %17 = vector.broadcast %cst_9 : f32 to vector<16x1xf32>
    %18 = arith.addf %14, %17 : vector<16x1xf32>
    %19 = math.rsqrt %18 : vector<16x1xf32>
    %20 = vector.broadcast %19 : vector<16x1xf32> to vector<16x32xf32>
    %21 = arith.mulf %16, %20 : vector<16x32xf32>
    %22 = vector.broadcast %2 : vector<1x32xf32> to vector<16x32xf32>
    %23 = arith.mulf %21, %22 : vector<16x32xf32>
    %24 = vector.broadcast %3 : vector<1x32xf32> to vector<16x32xf32>
    %25 = arith.addf %23, %24 : vector<16x32xf32>
    %c0_10 = arith.constant 0 : index
    %c0_11 = arith.constant 0 : index
    %26 = vector.load %arg4[%c0_10, %c0_11] : memref<1x32xf32, #tpu.memory_space<vmem>>, vector<1x32xf32>
    %cst_12 = arith.constant dense<0.000000e+00> : vector<1x16xf32>
    %27 = tpu.matmul %26, %25, %cst_12 {dimension_numbers = #tpu.dot_dimension_numbers<[1], [1], [0], [0], [0, 0, 1, 0], [], []>} : vector<1x32xf32>, vector<16x32xf32>, vector<1x16xf32> -> vector<1x16xf32>
    %c0_13 = arith.constant 0 : index
    %c0_14 = arith.constant 0 : index
    %28 = vector.load %arg5[%c0_13, %c0_14] : memref<1x1xf32, #tpu.memory_space<vmem>>, vector<1x1xf32>
    %29 = vector.extract %28[0, 0] : f32 from vector<1x1xf32>
    %30 = vector.broadcast %29 : f32 to vector<1x16xf32>
    %31 = arith.addf %27, %30 : vector<1x16xf32>
    %c0_15 = arith.constant 0 : index
    %c0_16 = arith.constant 0 : index
    %c0_17 = arith.constant 0 : index
    %32 = vector.load %arg6[%c0_15, %c0_16, %c0_17] : memref<1x1x16xf32, #tpu.memory_space<vmem>>, vector<1x1x16xf32>
    %33 = vector.shape_cast %32 : vector<1x1x16xf32> to vector<1x16xf32>
    %34 = vector.shape_cast %31 : vector<1x16xf32> to vector<1x1x16xf32>
    tpu.vector_store %arg6[%c0_15, %c0_16, %c0_17], %34 {strides = array<i32>} : memref<1x1x16xf32, #tpu.memory_space<vmem>>, vector<1x1x16xf32>,
    return
  }
  func.func @transform_0(%arg0: i32) -> (i32, i32, i32) {
    %c0_i32 = arith.constant 0 : i32
    %c0_i32_0 = arith.constant 0 : i32
    %c0_i32_1 = arith.constant 0 : i32
    return %arg0, %c0_i32, %c0_i32_0 : i32, i32, i32
  }
  func.func @transform_1(%arg0: i32) -> (i32, i32) {
    %c0_i32 = arith.constant 0 : i32
    %c0_i32_0 = arith.constant 0 : i32
    %c0_i32_1 = arith.constant 0 : i32
    return %c0_i32, %c0_i32_0 : i32, i32
  }
  func.func @transform_2(%arg0: i32) -> (i32, i32) {
    %c0_i32 = arith.constant 0 : i32
    %c0_i32_0 = arith.constant 0 : i32
    %c0_i32_1 = arith.constant 0 : i32
    return %c0_i32, %c0_i32_0 : i32, i32
  }
  func.func @transform_3(%arg0: i32) -> (i32, i32) {
    %c0_i32 = arith.constant 0 : i32
    %c0_i32_0 = arith.constant 0 : i32
    %c0_i32_1 = arith.constant 0 : i32
    return %c0_i32, %c0_i32_0 : i32, i32
  }
  func.func @transform_4(%arg0: i32) -> (i32, i32) {
    %c0_i32 = arith.constant 0 : i32
    %c0_i32_0 = arith.constant 0 : i32
    %c0_i32_1 = arith.constant 0 : i32
    return %c0_i32, %c0_i32_0 : i32, i32
  }
  func.func @transform_5(%arg0: i32) -> (i32, i32, i32) {
    %c0_i32 = arith.constant 0 : i32
    %c0_i32_0 = arith.constant 0 : i32
    %c0_i32_1 = arith.constant 0 : i32
    return %arg0, %c0_i32, %c0_i32_0 : i32, i32, i32
  }
}

</mosaic_0001>

<llo_original>
// kernel: transformer_forward.4
$region0: #{transformer_forward.4}
  #allocation0 [shape = 'u32[]', space=smem, size = 0x4, offset = 0x4, fixed_abs, tag = 'smem constant byte address 0x4 - core index']
  #allocation1 [shape = 'u32[144,128]{1,0:T(1,128)}', space=vmem, size = 0x12000, scoped, tag = 'internal scratch']
  %s0 = inlined_call_operand.vmem [shape: f32[2,16,4], index: 0, kind: input, shape index: {}]
  %s1 = inlined_call_operand.vmem [shape: f32[4,32], index: 1, kind: input, shape index: {}]
  %s2 = inlined_call_operand.vmem [shape: f32[1,32], index: 2, kind: input, shape index: {}]
  %s3 = inlined_call_operand.vmem [shape: f32[16,32], index: 3, kind: input, shape index: {}]
  %s4 = inlined_call_operand.vmem [shape: f32[2,16,32], index: 4, kind: output, shape index: {}]
  %s5 = sld [smem:[#allocation0]]
  $region49: #{transformer_forward.4} parent=0
    _
  %s7 = ssub.s32 1, %s5
  %s8 = scalar_select 0, %s7, %s5
  loop: start=0, step=1, limit=4
  $region2: #{transformer_forward.4} parent=0 // loop_pre_header
    _
  $region3: #{transformer_forward.4} parent=0 // loop_header
    %s10 = sphi 0, %s14
    %p11 = scmp.ge.s32.totalorder %s10, 4
    %s20 = sphi 0, %s22
    %s23 = sphi 0, %s20
    %s24 = sphi 0, %s23
    %s40 = sphi 0, %s24
    %s44 = sphi 0, %s44
    %s46 = sphi 0, %s44
    %s47 = sphi 0, %s46
    %s61 = sphi 0, %s47
    %s65 = sphi 0, %s65
    %s67 = sphi 0, %s65
    %s68 = sphi 0, %s67
    %s82 = sphi 0, %s68
    %s86 = sphi 0, %s86
    %s88 = sphi 0, %s86
    %s89 = sphi 0, %s88
    %s103 = sphi 0, %s89
    %s109 = sphi 0, %s111
    %s112 = sphi 0, %s109
    %s113 = sphi 0, %s112
    %s129 = sphi 0, %s113
  $region4: #{transformer_forward.4} parent=0 // loop_header_branch
    %13 = sbr.rel (%p11) target = $region8
  $region5: #{transformer_forward.4} parent=0 // loop_body
    %s15 = ssub.s32 %s10, 1
    %s16 = ssub.s32 %s10, 2
    %s17 = sadd.s32 %s10, 1
    %s18 = ssub.s32 %s10, %s17
    %p19 = scmp.eq.s32.totalorder %s18, 0
    %s21 = sadd.s32 %s20, 1
    %s22 = scalar_select %p19, %s20, %s21
    %p25 = pneg %p19
    %p26 = scmp.eq.s32.totalorder %s10, 1
    %p27 = por %p25, %p26
    %p28 = scmp.ne.s32.totalorder %s20, %s23
    %p29 = scmp.eq.s32.totalorder %s10, 0
    %p30 = por %p28, %p29
    %p31 = scmp.ne.s32.totalorder %s20, %s23
    %p32 = scmp.eq.s32.totalorder %s15, 1
    %p33 = por %p31, %p32
    %p34 = scmp.ne.s32.totalorder %s23, %s24
    %p35 = scmp.eq.s32.totalorder %s15, 0
    %p36 = por %p34, %p35
    %p37 = scmp.ne.s32.totalorder %s23, %s24
    %p38 = scmp.eq.s32.totalorder %s16, 1
    %p39 = por %p37, %p38
    %p41 = scmp.ne.s32.totalorder %s24, %s40
    %p42 = scmp.eq.s32.totalorder %s16, 0
    %p43 = por %p41, %p42
    %s45 = sadd.s32 %s44, 1
    %p48 = scmp.eq.s32.totalorder %s10, 1
    %p49 = scmp.ne.s32.totalorder %s44, %s46
    %p50 = scmp.eq.s32.totalorder %s10, 0
    %p51 = por %p49, %p50
    %p52 = scmp.ne.s32.totalorder %s44, %s46
    %p53 = scmp.eq.s32.totalorder %s15, 1
    %p54 = por %p52, %p53
    %p55 = scmp.ne.s32.totalorder %s46, %s47
    %p56 = scmp.eq.s32.totalorder %s15, 0
    %p57 = por %p55, %p56
    %p58 = scmp.ne.s32.totalorder %s46, %s47
    %p59 = scmp.eq.s32.totalorder %s16, 1
    %p60 = por %p58, %p59
    %p62 = scmp.ne.s32.totalorder %s47, %s61
    %p63 = scmp.eq.s32.totalorder %s16, 0
    %p64 = por %p62, %p63
    %s66 = sadd.s32 %s65, 1
    %p69 = scmp.eq.s32.totalorder %s10, 1
    %p70 = scmp.ne.s32.totalorder %s65, %s67
    %p71 = scmp.eq.s32.totalorder %s10, 0
    %p72 = por %p70, %p71
    %p73 = scmp.ne.s32.totalorder %s65, %s67
    %p74 = scmp.eq.s32.totalorder %s15, 1
    %p75 = por %p73, %p74
    %p76 = scmp.ne.s32.totalorder %s67, %s68
    %p77 = scmp.eq.s32.totalorder %s15, 0
    %p78 = por %p76, %p77
    %p79 = scmp.ne.s32.totalorder %s67, %s68
    %p80 = scmp.eq.s32.totalorder %s16, 1
    %p81 = por %p79, %p80
    %p83 = scmp.ne.s32.totalorder %s68, %s82
    %p84 = scmp.eq.s32.totalorder %s16, 0
    %p85 = por %p83, %p84
    %s87 = sadd.s32 %s86, 1
    %p90 = scmp.eq.s32.totalorder %s10, 1
    %p91 = scmp.ne.s32.totalorder %s86, %s88
    %p92 = scmp.eq.s32.totalorder %s10, 0
    %p93 = por %p91, %p92
    %p94 = scmp.ne.s32.totalorder %s86, %s88
    %p95 = scmp.eq.s32.totalorder %s15, 1
    %p96 = por %p94, %p95
    %p97 = scmp.ne.s32.totalorder %s88, %s89
    %p98 = scmp.eq.s32.totalorder %s15, 0
    %p99 = por %p97, %p98
    %p100 = scmp.ne.s32.totalorder %s88, %s89
    %p101 = scmp.eq.s32.totalorder %s16, 1
    %p102 = por %p100, %p101
    %p104 = scmp.ne.s32.totalorder %s89, %s103
    %p105 = scmp.eq.s32.totalorder %s16, 0
    %p106 = por %p104, %p105
    %s107 = ssub.s32 %s10, %s17
    %p108 = scmp.eq.s32.totalorder %s107, 0
    %s110 = sadd.s32 %s109, 1
    %s111 = scalar_select %p108, %s109, %s110
    %p114 = pneg %p108
    %p115 = scmp.eq.s32.totalorder %s10, 1
    %p116 = por %p114, %p115
    %p117 = scmp.ne.s32.totalorder %s109, %s112
    %p118 = scmp.eq.s32.totalorder %s10, 0
    %p119 = por %p117, %p118
    %p120 = scmp.ne.s32.totalorder %s109, %s112
    %p121 = scmp.eq.s32.totalorder %s15, 1
    %p122 = por %p120, %p121
    %p123 = scmp.ne.s32.totalorder %s112, %s113
    %p124 = scmp.eq.s32.totalorder %s15, 0
    %p125 = por %p123, %p124
    %p126 = scmp.ne.s32.totalorder %s112, %s113
    %p127 = scmp.eq.s32.totalorder %s16, 1
    %p128 = por %p126, %p127
    %p130 = scmp.ne.s32.totalorder %s113, %s129
    %p131 = scmp.eq.s32.totalorder %s16, 0
    %p132 = por %p130, %p131
    %p133 = scmp.le.s32.totalorder 1, %s10
    %p134 = scmp.lt.s32.totalorder %s10, 3
    %p135 = pnand %p133, %p134
    %p136 = pneg %p135
    // Predicated region
    $region9: #{transformer_forward.4} parent=5 // pred_check
      _
    $region10: #{transformer_forward.4} parent=5 // pred_check_branch
      %138 = sbr.rel (%p135) target = $region12
    $region11: #{transformer_forward.4} parent=5 // pred_region
      %s139 = ssub.s32 %s10, 1
      // Predicated region
      $region13: #{transformer_forward.4} parent=11 // pred_check
        %p140 = pneg %p57
      $region14: #{transformer_forward.4} parent=11 // pred_check_branch
        %142 = sbr.rel (%p140) target = $region16
      $region15: #{transformer_forward.4} parent=11 // pred_region
        _
      $region16: #{transformer_forward.4} parent=11 // pred_fallthru
        _
      // Predicated region
      $region17: #{transformer_forward.4} parent=11 // pred_check
        %p143 = pneg %p78
      $region18: #{transformer_forward.4} parent=11 // pred_check_branch
        %145 = sbr.rel (%p143) target = $region20
      $region19: #{transformer_forward.4} parent=11 // pred_region
        _
      $region20: #{transformer_forward.4} parent=11 // pred_fallthru
        _
      // Predicated region
      $region21: #{transformer_forward.4} parent=11 // pred_check
        %p146 = pneg %p99
      $region22: #{transformer_forward.4} parent=11 // pred_check_branch
        %148 = sbr.rel (%p146) target = $region24
      $region23: #{transformer_forward.4} parent=11 // pred_region
        _
      $region24: #{transformer_forward.4} parent=11 // pred_fallthru
        _
    $region12: #{transformer_forward.4} parent=5 // pred_fallthru
      _
    %p149 = scmp.lt.s32.totalorder %s10, 2
    // Predicated region
    $region25: #{transformer_forward.4} parent=5 // pred_check
      %p150 = pneg %p149
    $region26: #{transformer_forward.4} parent=5 // pred_check_branch
      %152 = sbr.rel (%p150) target = $region28
    $region27: #{transformer_forward.4} parent=5 // pred_region
      // Predicated region
      $region29: #{transformer_forward.4} parent=27 // pred_check
        %p153 = pneg %p30
      $region30: #{transformer_forward.4} parent=27 // pred_check_branch
        %155 = sbr.rel (%p153) target = $region32
      $region31: #{transformer_forward.4} parent=27 // pred_region
        %p156 = scmp.lt.s32.totalorder %s10, 1
        %s157 = scalar_select %p156, %s10, 1
        %s158 = smul.addr %s157, 2
        %s159 = smul.addr %s158, 8
        %s160 = scalar_lea.vmem %s0, %s159
      $region32: #{transformer_forward.4} parent=27 // pred_fallthru
        _
    $region28: #{transformer_forward.4} parent=5 // pred_fallthru
      _
    %p161 = scmp.le.s32.totalorder 1, %s10
    %p162 = scmp.lt.s32.totalorder %s10, 3
    %p163 = pnand %p161, %p162
    %p164 = pneg %p163
    // Predicated region
    $region33: #{transformer_forward.4} parent=5 // pred_check
      _
    $region34: #{transformer_forward.4} parent=5 // pred_check_branch
      %166 = sbr.rel (%p163) target = $region36
    $region35: #{transformer_forward.4} parent=5 // pred_region
      %s167 = ssub.s32 %s10, 1
      %p168 = scmp.lt.s32.totalorder %s15, 1
      %s169 = scalar_select %p168, %s15, 1
      %s170 = smul.addr %s169, 2
      %s171 = smul.addr %s170, 8
      %s172 = scalar_lea.vmem %s0, %s171
      %p173 = pneg %p36
      %p174 = pneg %p33
      %p175 = pneg %p57
      %p176 = pneg %p54
      %p177 = pneg %p78
      %p178 = pneg %p75
      %p179 = pneg %p99
      %p180 = pneg %p96
      %p181 = pneg %p125
      %p182 = pneg %p122
      %p183 = scmp.lt.s32.totalorder %s15, 1
      %s184 = scalar_select %p183, %s15, 1
      %s185 = smul.addr %s184, 2
      %s186 = smul.addr %s185, 8
      %s187 = scalar_lea.vmem %s4, %s186
      %p188 = scmp.lt.s32.totalorder %s15, 1
      %s189 = scalar_select %p188, %s15, 1
      %s190 = smul.addr %s189, 2
      %s191 = smul.addr %s190, 8
      %s192 = scalar_lea.vmem %s0, %s191
      %p193 = scmp.lt.s32.totalorder %s15, 1
      %s194 = scalar_select %p193, %s15, 1
      %s195 = smul.addr %s194, 2
      %s196 = smul.addr %s195, 8
      %s197 = scalar_lea.vmem %s4, %s196
      %v198 = vld [vmem:[%s192] sm:$0xff]
      %v199 = vld [vmem:[%s192 + $0x8] sm:$0xff]
      %v200 = vld [vmem:[%s1] sm:$0xf]
      %v201 = vld [vmem:[%s2] sm:$0x1]
      %v203 = vlaneseq
      %v204 = vshrl.u32 %v203, 7
      %v205 = vsub.s32 0, %v204
      %v206 = vrot.slane %v201, %v205
      %vm208 = vcmask 31744
      %v210 = vsel %vm208, %v198, 0
      %v213 = vsel %vm208, %v199, 0
      %vm215 = vcmask 1043456
      %v217 = vsel %vm215, %v200, 0
      %219 = vmatprep.subr.mxu0 0.0
      %220 = vmatpush1.msra.mxu0 %v217
      %221 = vmatprep.subr.mxu0 0.0
      %222 = vmatpush1.msra.mxu0 0.0
      %223 = vmatprep.subr.mxu0 0.0
      %224 = vmatpush1.msra.mxu0 0.0
      %225 = vmatprep.subr.mxu0 0.0
      %226 = vmatpush1.msra.mxu0 0.0
      %227 = vmatprep.subr.mxu0 0.0
      %228 = vmatpush1.msra.mxu0 0.0
      %229 = vmatprep.subr.mxu0 0.0
      %230 = vmatpush1.msra.mxu0 0.0
      %231 = vmatprep.subr.mxu0 0.0
      %232 = vmatpush1.msra.mxu0 0.0
      %233 = vmatprep.subr.mxu0 0.0
      %234 = vmatpush1.msra.mxu0 0.0
      %235 = vmatprep.subr.mxu0 0.0
      %236 = vmatpush1.msra.mxu0 0.0
      %237 = vmatprep.subr.mxu0 0.0
      %238 = vmatpush1.msra.mxu0 0.0
      %239 = vmatprep.subr.mxu0 0.0
      %240 = vmatpush1.msra.mxu0 0.0
      %241 = vmatprep.subr.mxu0 0.0
      %242 = vmatpush1.msra.mxu0 0.0
      %243 = vmatprep.subr.mxu0 0.0
      %244 = vmatpush1.msra.mxu0 0.0
      %245 = vmatprep.subr.mxu0 0.0
      %246 = vmatpush1.msra.mxu0 0.0
      %247 = vmatprep.subr.mxu0 0.0
      %248 = vmatpush1.msra.mxu0 0.0
      %249 = vmatprep.subr.mxu0 0.0
      %250 = vmatpush1.msra.mxu0 0.0
      %251 = vmatprep.subr.mxu0 0.0
      %252 = vmatpush1.msra.mxu0 0.0
      %253 = vmatprep.subr.mxu0 0.0
      %254 = vmatpush1.msra.mxu0 0.0
      %255 = vmatprep.subr.mxu0 0.0
      %256 = vmatpush1.msra.mxu0 0.0
      %257 = vmatprep.subr.mxu0 0.0
      %258 = vmatpush1.msra.mxu0 0.0
      %259 = vmatprep.subr.mxu0 0.0
      %260 = vmatpush1.msra.mxu0 0.0
      %261 = vmatprep.subr.mxu0 0.0
      %262 = vmatpush1.msra.mxu0 0.0
      %263 = vmatprep.subr.mxu0 0.0
      %264 = vmatpush1.msra.mxu0 0.0
      %265 = vmatprep.subr.mxu0 0.0
      %266 = vmatpush1.msra.mxu0 0.0
      %267 = vmatprep.subr.mxu0 0.0
      %268 = vmatpush1.msra.mxu0 0.0
      %269 = vmatprep.subr.mxu0 0.0
      %270 = vmatpush1.msra.mxu0 0.0
      %271 = vmatprep.subr.mxu0 0.0
      %272 = vmatpush1.msra.mxu0 0.0
      %273 = vmatprep.subr.mxu0 0.0
      %274 = vmatpush1.msra.mxu0 0.0
      %275 = vmatprep.subr.mxu0 0.0
      %276 = vmatpush1.msra.mxu0 0.0
      %277 = vmatprep.subr.mxu0 0.0
      %278 = vmatpush1.msra.mxu0 0.0
      %279 = vmatprep.subr.mxu0 0.0
      %280 = vmatpush1.msra.mxu0 0.0
      %281 = vmatprep.subr.mxu0 0.0
      %282 = vmatpush1.msra.mxu0 0.0
      %283 = vmatprep.mubr.f32.mxu0 0.0
      %284 = vmatmul.mubr.f32.gmra.mrb[0].mxu0 %v210
      %v285 = vpop.f32.mrb[0].mxu0
      %v286 = vadd.f32 %v206, %v285
      %v287 = vpop.f32.mrb[0].mxu0
      %288 = vmatprep.mubr.f32.mxu0 0.0
      %289 = vmatmul.mubr.f32.gmra.mrb[0].mxu0 %v213
      %v290 = vpop.f32.mrb[0].mxu0
      %v291 = vadd.f32 %v206, %v290
      %v292 = vpop.f32.mrb[0].mxu0
      %293 = vdwg.mxu0
      %v294 = vld [vmem:[%s3] sm:$0xff]
      %v295 = vld [vmem:[%s3 + $0x8] sm:$0xff]
      %v296 = vadd.f32 %v286, %v294
      %v297 = vadd.f32 %v291, %v295
      %vm298 = vcmask 261120
      %299 = vst.msk [vmem:[%s197] sm:$0xff] %vm298, %v296
      %300 = vst.msk [vmem:[%s197 + $0x8] sm:$0xff] %vm298, %v297
      %p301 = scmp.lt.s32.totalorder %s15, 1
      %s302 = scalar_select %p301, %s15, 1
      %s303 = smul.addr %s302, 2
      %s304 = smul.addr %s303, 8
      %s305 = scalar_lea.vmem %s4, %s304
      // Predicated region
      $region37: #{transformer_forward.4} parent=35 // pred_check
        %p306 = pneg %p122
      $region38: #{transformer_forward.4} parent=35 // pred_check_branch
        %308 = sbr.rel (%p306) target = $region40
      $region39: #{transformer_forward.4} parent=35 // pred_region
        _
      $region40: #{transformer_forward.4} parent=35 // pred_fallthru
        _
    $region36: #{transformer_forward.4} parent=5 // pred_fallthru
      _
    %p309 = scmp.le.s32.totalorder 2, %s10
    // Predicated region
    $region41: #{transformer_forward.4} parent=5 // pred_check
      %p310 = pneg %p309
    $region42: #{transformer_forward.4} parent=5 // pred_check_branch
      %312 = sbr.rel (%p310) target = $region44
    $region43: #{transformer_forward.4} parent=5 // pred_region
      %s313 = ssub.s32 %s10, 2
      // Predicated region
      $region45: #{transformer_forward.4} parent=43 // pred_check
        %p314 = pneg %p128
      $region46: #{transformer_forward.4} parent=43 // pred_check_branch
        %316 = sbr.rel (%p314) target = $region48
      $region47: #{transformer_forward.4} parent=43 // pred_region
        %p317 = scmp.lt.s32.totalorder %s16, 1
        %s318 = scalar_select %p317, %s16, 1
        %s319 = smul.addr %s318, 2
        %s320 = smul.addr %s319, 8
        %s321 = scalar_lea.vmem %s4, %s320
      $region48: #{transformer_forward.4} parent=43 // pred_fallthru
        _
    $region44: #{transformer_forward.4} parent=5 // pred_fallthru
      _
  $region6: #{transformer_forward.4} parent=0 // loop_footer
    %s14 = sadd.s32 1, %s10
  $region7: #{transformer_forward.4} parent=0 // loop_footer_branch
    %9 = sbr.rel target = $region3
  $region8: #{transformer_forward.4} parent=0 // loop_exit
    _

// kernel: transformer_forward.7
$region0: #{transformer_forward.7}
  #allocation0 [shape = 'u32[]', space=smem, size = 0x4, offset = 0x4, fixed_abs, tag = 'smem constant byte address 0x4 - core index']
  #allocation1 [shape = 'u32[144,128]{1,0:T(1,128)}', space=vmem, size = 0x12000, scoped, tag = 'internal scratch']
  #allocation2 [shape = 'f32[1,1]{1,0:T(1,128)S(1)}', space=vmem, size = 0x200, scoped, tag = 'scoped memory for transformer_forward.7']
  %s0 = inlined_call_operand.vmem [shape: f32[2,16,32], index: 0, kind: input, shape index: {}]
  %s1 = inlined_call_operand.vmem [shape: f32[1,32], index: 1, kind: input, shape index: {}]
  %s2 = inlined_call_operand.vmem [shape: f32[1,32], index: 2, kind: input, shape index: {}]
  %s3 = inlined_call_operand.vmem [shape: f32[1,32], index: 3, kind: input, shape index: {}]
  %s4 = inlined_call_operand.<no memory space> [shape: f32[1,1], index: 4, kind: input, shape index: {}]
  %s5 = inlined_call_operand.vmem [shape: f32[2,1,16], index: 5, kind: output, shape index: {}]
  %s6 = sld [smem:[#allocation0]]
  $region53: #{transformer_forward.7} parent=0
    _
  %s8 = ssub.s32 1, %s6
  %s9 = scalar_select 0, %s8, %s6
  %v10 = vstv %s4
  %11 = vst [vmem:[#allocation2] sm:$0x1] %v10
  loop: start=0, step=1, limit=4
  $region2: #{transformer_forward.7} parent=0 // loop_pre_header
    _
  $region3: #{transformer_forward.7} parent=0 // loop_header
    %s13 = sphi 0, %s17
    %p14 = scmp.ge.s32.totalorder %s13, 4
    %s23 = sphi 0, %s25
    %s26 = sphi 0, %s23
    %s27 = sphi 0, %s26
    %s43 = sphi 0, %s27
    %s47 = sphi 0, %s47
    %s49 = sphi 0, %s47
    %s50 = sphi 0, %s49
    %s64 = sphi 0, %s50
    %s68 = sphi 0, %s68
    %s70 = sphi 0, %s68
    %s71 = sphi 0, %s70
    %s85 = sphi 0, %s71
    %s89 = sphi 0, %s89
    %s91 = sphi 0, %s89
    %s92 = sphi 0, %s91
    %s106 = sphi 0, %s92
    %s110 = sphi 0, %s110
    %s112 = sphi 0, %s110
    %s113 = sphi 0, %s112
    %s127 = sphi 0, %s113
    %s133 = sphi 0, %s135
    %s136 = sphi 0, %s133
    %s137 = sphi 0, %s136
    %s153 = sphi 0, %s137
  $region4: #{transformer_forward.7} parent=0 // loop_header_branch
    %16 = sbr.rel (%p14) target = $region8
  $region5: #{transformer_forward.7} parent=0 // loop_body
    %s18 = ssub.s32 %s13, 1
    %s19 = ssub.s32 %s13, 2
    %s20 = sadd.s32 %s13, 1
    %s21 = ssub.s32 %s13, %s20
    %p22 = scmp.eq.s32.totalorder %s21, 0
    %s24 = sadd.s32 %s23, 1
    %s25 = scalar_select %p22, %s23, %s24
    %p28 = pneg %p22
    %p29 = scmp.eq.s32.totalorder %s13, 1
    %p30 = por %p28, %p29
    %p31 = scmp.ne.s32.totalorder %s23, %s26
    %p32 = scmp.eq.s32.totalorder %s13, 0
    %p33 = por %p31, %p32
    %p34 = scmp.ne.s32.totalorder %s23, %s26
    %p35 = scmp.eq.s32.totalorder %s18, 1
    %p36 = por %p34, %p35
    %p37 = scmp.ne.s32.totalorder %s26, %s27
    %p38 = scmp.eq.s32.totalorder %s18, 0
    %p39 = por %p37, %p38
    %p40 = scmp.ne.s32.totalorder %s26, %s27
    %p41 = scmp.eq.s32.totalorder %s19, 1
    %p42 = por %p40, %p41
    %p44 = scmp.ne.s32.totalorder %s27, %s43
    %p45 = scmp.eq.s32.totalorder %s19, 0
    %p46 = por %p44, %p45
    %s48 = sadd.s32 %s47, 1
    %p51 = scmp.eq.s32.totalorder %s13, 1
    %p52 = scmp.ne.s32.totalorder %s47, %s49
    %p53 = scmp.eq.s32.totalorder %s13, 0
    %p54 = por %p52, %p53
    %p55 = scmp.ne.s32.totalorder %s47, %s49
    %p56 = scmp.eq.s32.totalorder %s18, 1
    %p57 = por %p55, %p56
    %p58 = scmp.ne.s32.totalorder %s49, %s50
    %p59 = scmp.eq.s32.totalorder %s18, 0
    %p60 = por %p58, %p59
    %p61 = scmp.ne.s32.totalorder %s49, %s50
    %p62 = scmp.eq.s32.totalorder %s19, 1
    %p63 = por %p61, %p62
    %p65 = scmp.ne.s32.totalorder %s50, %s64
    %p66 = scmp.eq.s32.totalorder %s19, 0
    %p67 = por %p65, %p66
    %s69 = sadd.s32 %s68, 1
    %p72 = scmp.eq.s32.totalorder %s13, 1
    %p73 = scmp.ne.s32.totalorder %s68, %s70
    %p74 = scmp.eq.s32.totalorder %s13, 0
    %p75 = por %p73, %p74
    %p76 = scmp.ne.s32.totalorder %s68, %s70
    %p77 = scmp.eq.s32.totalorder %s18, 1
    %p78 = por %p76, %p77
    %p79 = scmp.ne.s32.totalorder %s70, %s71
    %p80 = scmp.eq.s32.totalorder %s18, 0
    %p81 = por %p79, %p80
    %p82 = scmp.ne.s32.totalorder %s70, %s71
    %p83 = scmp.eq.s32.totalorder %s19, 1
    %p84 = por %p82, %p83
    %p86 = scmp.ne.s32.totalorder %s71, %s85
    %p87 = scmp.eq.s32.totalorder %s19, 0
    %p88 = por %p86, %p87
    %s90 = sadd.s32 %s89, 1
    %p93 = scmp.eq.s32.totalorder %s13, 1
    %p94 = scmp.ne.s32.totalorder %s89, %s91
    %p95 = scmp.eq.s32.totalorder %s13, 0
    %p96 = por %p94, %p95
    %p97 = scmp.ne.s32.totalorder %s89, %s91
    %p98 = scmp.eq.s32.totalorder %s18, 1
    %p99 = por %p97, %p98
    %p100 = scmp.ne.s32.totalorder %s91, %s92
    %p101 = scmp.eq.s32.totalorder %s18, 0
    %p102 = por %p100, %p101
    %p103 = scmp.ne.s32.totalorder %s91, %s92
    %p104 = scmp.eq.s32.totalorder %s19, 1
    %p105 = por %p103, %p104
    %p107 = scmp.ne.s32.totalorder %s92, %s106
    %p108 = scmp.eq.s32.totalorder %s19, 0
    %p109 = por %p107, %p108
    %s111 = sadd.s32 %s110, 1
    %p114 = scmp.eq.s32.totalorder %s13, 1
    %p115 = scmp.ne.s32.totalorder %s110, %s112
    %p116 = scmp.eq.s32.totalorder %s13, 0
    %p117 = por %p115, %p116
    %p118 = scmp.ne.s32.totalorder %s110, %s112
    %p119 = scmp.eq.s32.totalorder %s18, 1
    %p120 = por %p118, %p119
    %p121 = scmp.ne.s32.totalorder %s112, %s113
    %p122 = scmp.eq.s32.totalorder %s18, 0
    %p123 = por %p121, %p122
    %p124 = scmp.ne.s32.totalorder %s112, %s113
    %p125 = scmp.eq.s32.totalorder %s19, 1
    %p126 = por %p124, %p125
    %p128 = scmp.ne.s32.totalorder %s113, %s127
    %p129 = scmp.eq.s32.totalorder %s19, 0
    %p130 = por %p128, %p129
    %s131 = ssub.s32 %s13, %s20
    %p132 = scmp.eq.s32.totalorder %s131, 0
    %s134 = sadd.s32 %s133, 1
    %s135 = scalar_select %p132, %s133, %s134
    %p138 = pneg %p132
    %p139 = scmp.eq.s32.totalorder %s13, 1
    %p140 = por %p138, %p139
    %p141 = scmp.ne.s32.totalorder %s133, %s136
    %p142 = scmp.eq.s32.totalorder %s13, 0
    %p143 = por %p141, %p142
    %p144 = scmp.ne.s32.totalorder %s133, %s136
    %p145 = scmp.eq.s32.totalorder %s18, 1
    %p146 = por %p144, %p145
    %p147 = scmp.ne.s32.totalorder %s136, %s137
    %p148 = scmp.eq.s32.totalorder %s18, 0
    %p149 = por %p147, %p148
    %p150 = scmp.ne.s32.totalorder %s136, %s137
    %p151 = scmp.eq.s32.totalorder %s19, 1
    %p152 = por %p150, %p151
    %p154 = scmp.ne.s32.totalorder %s137, %s153
    %p155 = scmp.eq.s32.totalorder %s19, 0
    %p156 = por %p154, %p155
    %p157 = scmp.le.s32.totalorder 1, %s13
    %p158 = scmp.lt.s32.totalorder %s13, 3
    %p159 = pnand %p157, %p158
    %p160 = pneg %p159
    // Predicated region
    $region9: #{transformer_forward.7} parent=5 // pred_check
      _
    $region10: #{transformer_forward.7} parent=5 // pred_check_branch
      %162 = sbr.rel (%p159) target = $region12
    $region11: #{transformer_forward.7} parent=5 // pred_region
      %s163 = ssub.s32 %s13, 1
      // Predicated region
      $region13: #{transformer_forward.7} parent=11 // pred_check
        %p164 = pneg %p60
      $region14: #{transformer_forward.7} parent=11 // pred_check_branch
        %166 = sbr.rel (%p164) target = $region16
      $region15: #{transformer_forward.7} parent=11 // pred_region
        _
      $region16: #{transformer_forward.7} parent=11 // pred_fallthru
        _
      // Predicated region
      $region17: #{transformer_forward.7} parent=11 // pred_check
        %p167 = pneg %p81
      $region18: #{transformer_forward.7} parent=11 // pred_check_branch
        %169 = sbr.rel (%p167) target = $region20
      $region19: #{transformer_forward.7} parent=11 // pred_region
        _
      $region20: #{transformer_forward.7} parent=11 // pred_fallthru
        _
      // Predicated region
      $region21: #{transformer_forward.7} parent=11 // pred_check
        %p170 = pneg %p102
      $region22: #{transformer_forward.7} parent=11 // pred_check_branch
        %172 = sbr.rel (%p170) target = $region24
      $region23: #{transformer_forward.7} parent=11 // pred_region
        _
      $region24: #{transformer_forward.7} parent=11 // pred_fallthru
        _
      // Predicated region
      $region25: #{transformer_forward.7} parent=11 // pred_check
        %p173 = pneg %p123
      $region26: #{transformer_forward.7} parent=11 // pred_check_branch
        %175 = sbr.rel (%p173) target = $region28
      $region27: #{transformer_forward.7} parent=11 // pred_region
        _
      $region28: #{transformer_forward.7} parent=11 // pred_fallthru
        _
    $region12: #{transformer_forward.7} parent=5 // pred_fallthru
      _
    %p176 = scmp.lt.s32.totalorder %s13, 2
    // Predicated region
    $region29: #{transformer_forward.7} parent=5 // pred_check
      %p177 = pneg %p176
    $region30: #{transformer_forward.7} parent=5 // pred_check_branch
      %179 = sbr.rel (%p177) target = $region32
    $region31: #{transformer_forward.7} parent=5 // pred_region
      // Predicated region
      $region33: #{transformer_forward.7} parent=31 // pred_check
        %p180 = pneg %p33
      $region34: #{transformer_forward.7} parent=31 // pred_check_branch
        %182 = sbr.rel (%p180) target = $region36
      $region35: #{transformer_forward.7} parent=31 // pred_region
        %p183 = scmp.lt.s32.totalorder %s13, 1
        %s184 = scalar_select %p183, %s13, 1
        %s185 = smul.addr %s184, 2
        %s186 = smul.addr %s185, 8
        %s187 = scalar_lea.vmem %s0, %s186
      $region36: #{transformer_forward.7} parent=31 // pred_fallthru
        _
    $region32: #{transformer_forward.7} parent=5 // pred_fallthru
      _
    %p188 = scmp.le.s32.totalorder 1, %s13
    %p189 = scmp.lt.s32.totalorder %s13, 3
    %p190 = pnand %p188, %p189
    %p191 = pneg %p190
    // Predicated region
    $region37: #{transformer_forward.7} parent=5 // pred_check
      _
    $region38: #{transformer_forward.7} parent=5 // pred_check_branch
      %193 = sbr.rel (%p190) target = $region40
    $region39: #{transformer_forward.7} parent=5 // pred_region
      %s194 = ssub.s32 %s13, 1
      %p195 = scmp.lt.s32.totalorder %s18, 1
      %s196 = scalar_select %p195, %s18, 1
      %s197 = smul.addr %s196, 2
      %s198 = smul.addr %s197, 8
      %s199 = scalar_lea.vmem %s0, %s198
      %p200 = pneg %p39
      %p201 = pneg %p36
      %p202 = pneg %p60
      %p203 = pneg %p57
      %p204 = pneg %p81
      %p205 = pneg %p78
      %p206 = pneg %p102
      %p207 = pneg %p99
      %p208 = pneg %p123
      %p209 = pneg %p120
      %p210 = pneg %p149
      %p211 = pneg %p146
      %p212 = scmp.lt.s32.totalorder %s18, 1
      %s213 = scalar_select %p212, %s18, 1
      %s214 = scalar_lea.vmem %s5, %s213
      %p215 = scmp.lt.s32.totalorder %s18, 1
      %s216 = scalar_select %p215, %s18, 1
      %s217 = smul.addr %s216, 2
      %s218 = smul.addr %s217, 8
      %s219 = scalar_lea.vmem %s0, %s218
      %p220 = scmp.lt.s32.totalorder %s18, 1
      %s221 = scalar_select %p220, %s18, 1
      %s222 = scalar_lea.vmem %s5, %s221
      %v223 = vld [vmem:[%s219] sm:$0xff]
      %v224 = vld [vmem:[%s219 + $0x8] sm:$0xff]
      %v225 = vld [vmem:[%s1] sm:$0x1]
      %v226 = vld [vmem:[%s2] sm:$0x1]
      %vm227 = vcmask 261120
      %v228 = vsel %vm227, %v223, 0.0
      %229 = vadd.xlane.f32.xlu0 %v228
      %v230 = vpop.xlane.xlu0 %229
      %v231 = vsel %vm227, %v224, 0.0
      %232 = vadd.xlane.f32.xlu0 %v231
      %v233 = vpop.xlane.xlu0 %232
      %v234 = vrcp.pop 32.0
      %v235 = vmul.f32 %v230, %v234
      %v236 = vmul.f32 %v233, %v234
      %v237 = vsub.f32 %v223, %v235
      %v238 = vsub.f32 %v224, %v236
      %v239 = vmul.f32 %v237, %v237
      %v240 = vmul.f32 %v238, %v238
      %v241 = vsel %vm227, %v239, 0.0
      %242 = vadd.xlane.f32.xlu0 %v241
      %v243 = vpop.xlane.xlu0 %242
      %v244 = vsel %vm227, %v240, 0.0
      %245 = vadd.xlane.f32.xlu0 %v244
      %v246 = vpop.xlane.xlu0 %245
      %v247 = vmul.f32 %v243, %v234
      %v248 = vmul.f32 %v246, %v234
      %v249 = vadd.f32 %v247, 1e-05
      %v250 = vadd.f32 %v248, 1e-05
      %v251 = vrsqrt.pop %v249
      %v252 = vrsqrt.pop %v250
      %v253 = vmul.f32 %v237, %v251
      %v254 = vmul.f32 %v238, %v252
      %v256 = vlaneseq
      %v257 = vshrl.u32 %v256, 7
      %v258 = vsub.s32 0, %v257
      %v259 = vrot.slane %v225, %v258
      %v261 = vmul.f32 %v253, %v259
      %v262 = vmul.f32 %v254, %v259
      %v264 = vlaneseq
      %v265 = vshrl.u32 %v264, 7
      %v266 = vsub.s32 0, %v265
      %v267 = vrot.slane %v226, %v266
      %v269 = vadd.f32 %v261, %v267
      %v270 = vadd.f32 %v262, %v267
      %v271 = vld [vmem:[%s3] sm:$0x1]
      %v272 = vld [vmem:[#allocation2] sm:$0x1]
      %s273 = vtos %v272
      %v274 = vstv %s273
      %v276 = vsel %vm227, %v271, 0
      %v279 = vsel %vm227, %v269, 0
      %v282 = vsel %vm227, %v270, 0
      %284 = vmatprep.subr.mxu0 0.0
      %285 = vmatpush1.xpose.msra.mxu0 %v279
      %286 = vmatprep.subr.mxu0 0.0
      %287 = vmatpush1.xpose.msra.mxu0 %v282
      %288 = vmatprep.subr.mxu0 0.0
      %289 = vmatpush1.xpose.msra.mxu0 0.0
      %290 = vmatprep.subr.mxu0 0.0
      %291 = vmatpush1.xpose.msra.mxu0 0.0
      %292 = vmatprep.subr.mxu0 0.0
      %293 = vmatpush1.xpose.msra.mxu0 0.0
      %294 = vmatprep.subr.mxu0 0.0
      %295 = vmatpush1.xpose.msra.mxu0 0.0
      %296 = vmatprep.subr.mxu0 0.0
      %297 = vmatpush1.xpose.msra.mxu0 0.0
      %298 = vmatprep.subr.mxu0 0.0
      %299 = vmatpush1.xpose.msra.mxu0 0.0
      %300 = vmatprep.subr.mxu0 0.0
      %301 = vmatpush1.xpose.msra.mxu0 0.0
      %302 = vmatprep.subr.mxu0 0.0
      %303 = vmatpush1.xpose.msra.mxu0 0.0
      %304 = vmatprep.subr.mxu0 0.0
      %305 = vmatpush1.xpose.msra.mxu0 0.0
      %306 = vmatprep.subr.mxu0 0.0
      %307 = vmatpush1.xpose.msra.mxu0 0.0
      %308 = vmatprep.subr.mxu0 0.0
      %309 = vmatpush1.xpose.msra.mxu0 0.0
      %310 = vmatprep.subr.mxu0 0.0
      %311 = vmatpush1.xpose.msra.mxu0 0.0
      %312 = vmatprep.subr.mxu0 0.0
      %313 = vmatpush1.xpose.msra.mxu0 0.0
      %314 = vmatprep.subr.mxu0 0.0
      %315 = vmatpush1.xpose.msra.mxu0 0.0
      %316 = vmatprep.subr.mxu0 0.0
      %317 = vmatpush1.xpose.msra.mxu0 0.0
      %318 = vmatprep.subr.mxu0 0.0
      %319 = vmatpush1.xpose.msra.mxu0 0.0
      %320 = vmatprep.subr.mxu0 0.0
      %321 = vmatpush1.xpose.msra.mxu0 0.0
      %322 = vmatprep.subr.mxu0 0.0
      %323 = vmatpush1.xpose.msra.mxu0 0.0
      %324 = vmatprep.subr.mxu0 0.0
      %325 = vmatpush1.xpose.msra.mxu0 0.0
      %326 = vmatprep.subr.mxu0 0.0
      %327 = vmatpush1.xpose.msra.mxu0 0.0
      %328 = vmatprep.subr.mxu0 0.0
      %329 = vmatpush1.xpose.msra.mxu0 0.0
      %330 = vmatprep.subr.mxu0 0.0
      %331 = vmatpush1.xpose.msra.mxu0 0.0
      %332 = vmatprep.subr.mxu0 0.0
      %333 = vmatpush1.xpose.msra.mxu0 0.0
      %334 = vmatprep.subr.mxu0 0.0
      %335 = vmatpush1.xpose.msra.mxu0 0.0
      %336 = vmatprep.subr.mxu0 0.0
      %337 = vmatpush1.xpose.msra.mxu0 0.0
      %338 = vmatprep.subr.mxu0 0.0
      %339 = vmatpush1.xpose.msra.mxu0 0.0
      %340 = vmatprep.subr.mxu0 0.0
      %341 = vmatpush1.xpose.msra.mxu0 0.0
      %342 = vmatprep.subr.mxu0 0.0
      %343 = vmatpush1.xpose.msra.mxu0 0.0
      %344 = vmatprep.subr.mxu0 0.0
      %345 = vmatpush1.xpose.msra.mxu0 0.0
      %346 = vmatprep.subr.mxu0 0.0
      %347 = vmatpush1.xpose.msra.mxu0 0.0
      %348 = vmatprep.mubr.f32.mxu0 0.0
      %349 = vmatmul.mubr.f32.gmra.mrb[0].mxu0 %v276
      %v350 = vpop.f32.mrb[0].mxu0
      %v351 = vadd.f32 %v274, %v350
      %v352 = vpop.f32.mrb[0].mxu0
      %353 = vdwg.mxu0
      %vm354 = vcmask 122880
      %355 = vst.msk [vmem:[%s222] sm:$0x1] %vm354, %v351
      %p356 = scmp.lt.s32.totalorder %s18, 1
      %s357 = scalar_select %p356, %s18, 1
      %s358 = scalar_lea.vmem %s5, %s357
      // Predicated region
      $region41: #{transformer_forward.7} parent=39 // pred_check
        %p359 = pneg %p146
      $region42: #{transformer_forward.7} parent=39 // pred_check_branch
        %361 = sbr.rel (%p359) target = $region44
      $region43: #{transformer_forward.7} parent=39 // pred_region
        _
      $region44: #{transformer_forward.7} parent=39 // pred_fallthru
        _
    $region40: #{transformer_forward.7} parent=5 // pred_fallthru
      _
    %p362 = scmp.le.s32.totalorder 2, %s13
    // Predicated region
    $region45: #{transformer_forward.7} parent=5 // pred_check
      %p363 = pneg %p362
    $region46: #{transformer_forward.7} parent=5 // pred_check_branch
      %365 = sbr.rel (%p363) target = $region48
    $region47: #{transformer_forward.7} parent=5 // pred_region
      %s366 = ssub.s32 %s13, 2
      // Predicated region
      $region49: #{transformer_forward.7} parent=47 // pred_check
        %p367 = pneg %p152
      $region50: #{transformer_forward.7} parent=47 // pred_check_branch
        %369 = sbr.rel (%p367) target = $region52
      $region51: #{transformer_forward.7} parent=47 // pred_region
        %p370 = scmp.lt.s32.totalorder %s19, 1
        %s371 = scalar_select %p370, %s19, 1
        %s372 = scalar_lea.vmem %s5, %s371
      $region52: #{transformer_forward.7} parent=47 // pred_fallthru
        _
    $region48: #{transformer_forward.7} parent=5 // pred_fallthru
      _
  $region6: #{transformer_forward.7} parent=0 // loop_footer
    %s17 = sadd.s32 1, %s13
  $region7: #{transformer_forward.7} parent=0 // loop_footer_branch
    %12 = sbr.rel target = $region3
  $region8: #{transformer_forward.7} parent=0 // loop_exit
    _

// kernel: transformer_forward.5
$region0: #{transformer_forward.5}
  #allocation0 [shape = 'u32[]', space=smem, size = 0x4, offset = 0x4, fixed_abs, tag = 'smem constant byte address 0x4 - core index']
  #allocation1 [shape = 'u32[144,128]{1,0:T(1,128)}', space=vmem, size = 0x12000, scoped, tag = 'internal scratch']
  #allocation2 [shape = 'f32[16,32]{1,0:T(8,128)}', space=vmem, size = 0x2000, scoped, tag = 'scratch operand']
  %s0 = inlined_call_operand.vmem [shape: f32[2,16,32], index: 0, kind: input, shape index: {}]
  %s1 = inlined_call_operand.vmem [shape: f32[1,32], index: 1, kind: input, shape index: {}]
  %s2 = inlined_call_operand.vmem [shape: f32[1,32], index: 2, kind: input, shape index: {}]
  %s3 = inlined_call_operand.vmem [shape: bf16[32,96], index: 3, kind: input, shape index: {}]
  %s4 = inlined_call_operand.vmem [shape: f32[1,96], index: 4, kind: input, shape index: {}]
  %s5 = inlined_call_operand.vmem [shape: bf16[32,32], index: 5, kind: input, shape index: {}]
  %s6 = inlined_call_operand.vmem [shape: f32[1,32], index: 6, kind: input, shape index: {}]
  %s7 = inlined_call_operand.vmem [shape: f32[1,32], index: 7, kind: input, shape index: {}]
  %s8 = inlined_call_operand.vmem [shape: f32[1,32], index: 8, kind: input, shape index: {}]
  %s9 = inlined_call_operand.vmem [shape: bf16[32,128], index: 9, kind: input, shape index: {}]
  %s10 = inlined_call_operand.vmem [shape: f32[1,128], index: 10, kind: input, shape index: {}]
  %s11 = inlined_call_operand.vmem [shape: bf16[128,32], index: 11, kind: input, shape index: {}]
  %s12 = inlined_call_operand.vmem [shape: f32[1,32], index: 12, kind: input, shape index: {}]
  %s13 = inlined_call_operand.vmem [shape: f32[2,16,32], index: 13, kind: output, shape index: {}]
  %s14 = sld [smem:[#allocation0]]
  $region85: #{transformer_forward.5} parent=0
    _
  %s16 = ssub.s32 1, %s14
  %s17 = scalar_select 0, %s16, %s14
  loop: start=0, step=1, limit=4
  $region2: #{transformer_forward.5} parent=0 // loop_pre_header
    _
  $region3: #{transformer_forward.5} parent=0 // loop_header
    %s19 = sphi 0, %s23
    %p20 = scmp.ge.s32.totalorder %s19, 4
    %s29 = sphi 0, %s31
    %s32 = sphi 0, %s29
    %s33 = sphi 0, %s32
    %s49 = sphi 0, %s33
    %s53 = sphi 0, %s53
    %s55 = sphi 0, %s53
    %s56 = sphi 0, %s55
    %s70 = sphi 0, %s56
    %s74 = sphi 0, %s74
    %s76 = sphi 0, %s74
    %s77 = sphi 0, %s76
    %s91 = sphi 0, %s77
    %s95 = sphi 0, %s95
    %s97 = sphi 0, %s95
    %s98 = sphi 0, %s97
    %s112 = sphi 0, %s98
    %s116 = sphi 0, %s116
    %s118 = sphi 0, %s116
    %s119 = sphi 0, %s118
    %s133 = sphi 0, %s119
    %s137 = sphi 0, %s137
    %s139 = sphi 0, %s137
    %s140 = sphi 0, %s139
    %s154 = sphi 0, %s140
    %s158 = sphi 0, %s158
    %s160 = sphi 0, %s158
    %s161 = sphi 0, %s160
    %s175 = sphi 0, %s161
    %s179 = sphi 0, %s179
    %s181 = sphi 0, %s179
    %s182 = sphi 0, %s181
    %s196 = sphi 0, %s182
    %s200 = sphi 0, %s200
    %s202 = sphi 0, %s200
    %s203 = sphi 0, %s202
    %s217 = sphi 0, %s203
    %s221 = sphi 0, %s221
    %s223 = sphi 0, %s221
    %s224 = sphi 0, %s223
    %s238 = sphi 0, %s224
    %s242 = sphi 0, %s242
    %s244 = sphi 0, %s242
    %s245 = sphi 0, %s244
    %s259 = sphi 0, %s245
    %s263 = sphi 0, %s263
    %s265 = sphi 0, %s263
    %s266 = sphi 0, %s265
    %s280 = sphi 0, %s266
    %s284 = sphi 0, %s284
    %s286 = sphi 0, %s284
    %s287 = sphi 0, %s286
    %s301 = sphi 0, %s287
    %s307 = sphi 0, %s309
    %s310 = sphi 0, %s307
    %s311 = sphi 0, %s310
    %s327 = sphi 0, %s311
  $region4: #{transformer_forward.5} parent=0 // loop_header_branch
    %22 = sbr.rel (%p20) target = $region8
  $region5: #{transformer_forward.5} parent=0 // loop_body
    %s24 = ssub.s32 %s19, 1
    %s25 = ssub.s32 %s19, 2
    %s26 = sadd.s32 %s19, 1
    %s27 = ssub.s32 %s19, %s26
    %p28 = scmp.eq.s32.totalorder %s27, 0
    %s30 = sadd.s32 %s29, 1
    %s31 = scalar_select %p28, %s29, %s30
    %p34 = pneg %p28
    %p35 = scmp.eq.s32.totalorder %s19, 1
    %p36 = por %p34, %p35
    %p37 = scmp.ne.s32.totalorder %s29, %s32
    %p38 = scmp.eq.s32.totalorder %s19, 0
    %p39 = por %p37, %p38
    %p40 = scmp.ne.s32.totalorder %s29, %s32
    %p41 = scmp.eq.s32.totalorder %s24, 1
    %p42 = por %p40, %p41
    %p43 = scmp.ne.s32.totalorder %s32, %s33
    %p44 = scmp.eq.s32.totalorder %s24, 0
    %p45 = por %p43, %p44
    %p46 = scmp.ne.s32.totalorder %s32, %s33
    %p47 = scmp.eq.s32.totalorder %s25, 1
    %p48 = por %p46, %p47
    %p50 = scmp.ne.s32.totalorder %s33, %s49
    %p51 = scmp.eq.s32.totalorder %s25, 0
    %p52 = por %p50, %p51
    %s54 = sadd.s32 %s53, 1
    %p57 = scmp.eq.s32.totalorder %s19, 1
    %p58 = scmp.ne.s32.totalorder %s53, %s55
    %p59 = scmp.eq.s32.totalorder %s19, 0
    %p60 = por %p58, %p59
    %p61 = scmp.ne.s32.totalorder %s53, %s55
    %p62 = scmp.eq.s32.totalorder %s24, 1
    %p63 = por %p61, %p62
    %p64 = scmp.ne.s32.totalorder %s55, %s56
    %p65 = scmp.eq.s32.totalorder %s24, 0
    %p66 = por %p64, %p65
    %p67 = scmp.ne.s32.totalorder %s55, %s56
    %p68 = scmp.eq.s32.totalorder %s25, 1
    %p69 = por %p67, %p68
    %p71 = scmp.ne.s32.totalorder %s56, %s70
    %p72 = scmp.eq.s32.totalorder %s25, 0
    %p73 = por %p71, %p72
    %s75 = sadd.s32 %s74, 1
    %p78 = scmp.eq.s32.totalorder %s19, 1
    %p79 = scmp.ne.s32.totalorder %s74, %s76
    %p80 = scmp.eq.s32.totalorder %s19, 0
    %p81 = por %p79, %p80
    %p82 = scmp.ne.s32.totalorder %s74, %s76
    %p83 = scmp.eq.s32.totalorder %s24, 1
    %p84 = por %p82, %p83
    %p85 = scmp.ne.s32.totalorder %s76, %s77
    %p86 = scmp.eq.s32.totalorder %s24, 0
    %p87 = por %p85, %p86
    %p88 = scmp.ne.s32.totalorder %s76, %s77
    %p89 = scmp.eq.s32.totalorder %s25, 1
    %p90 = por %p88, %p89
    %p92 = scmp.ne.s32.totalorder %s77, %s91
    %p93 = scmp.eq.s32.totalorder %s25, 0
    %p94 = por %p92, %p93
    %s96 = sadd.s32 %s95, 1
    %p99 = scmp.eq.s32.totalorder %s19, 1
    %p100 = scmp.ne.s32.totalorder %s95, %s97
    %p101 = scmp.eq.s32.totalorder %s19, 0
    %p102 = por %p100, %p101
    %p103 = scmp.ne.s32.totalorder %s95, %s97
    %p104 = scmp.eq.s32.totalorder %s24, 1
    %p105 = por %p103, %p104
    %p106 = scmp.ne.s32.totalorder %s97, %s98
    %p107 = scmp.eq.s32.totalorder %s24, 0
    %p108 = por %p106, %p107
    %p109 = scmp.ne.s32.totalorder %s97, %s98
    %p110 = scmp.eq.s32.totalorder %s25, 1
    %p111 = por %p109, %p110
    %p113 = scmp.ne.s32.totalorder %s98, %s112
    %p114 = scmp.eq.s32.totalorder %s25, 0
    %p115 = por %p113, %p114
    %s117 = sadd.s32 %s116, 1
    %p120 = scmp.eq.s32.totalorder %s19, 1
    %p121 = scmp.ne.s32.totalorder %s116, %s118
    %p122 = scmp.eq.s32.totalorder %s19, 0
    %p123 = por %p121, %p122
    %p124 = scmp.ne.s32.totalorder %s116, %s118
    %p125 = scmp.eq.s32.totalorder %s24, 1
    %p126 = por %p124, %p125
    %p127 = scmp.ne.s32.totalorder %s118, %s119
    %p128 = scmp.eq.s32.totalorder %s24, 0
    %p129 = por %p127, %p128
    %p130 = scmp.ne.s32.totalorder %s118, %s119
    %p131 = scmp.eq.s32.totalorder %s25, 1
    %p132 = por %p130, %p131
    %p134 = scmp.ne.s32.totalorder %s119, %s133
    %p135 = scmp.eq.s32.totalorder %s25, 0
    %p136 = por %p134, %p135
    %s138 = sadd.s32 %s137, 1
    %p141 = scmp.eq.s32.totalorder %s19, 1
    %p142 = scmp.ne.s32.totalorder %s137, %s139
    %p143 = scmp.eq.s32.totalorder %s19, 0
    %p144 = por %p142, %p143
    %p145 = scmp.ne.s32.totalorder %s137, %s139
    %p146 = scmp.eq.s32.totalorder %s24, 1
    %p147 = por %p145, %p146
    %p148 = scmp.ne.s32.totalorder %s139, %s140
    %p149 = scmp.eq.s32.totalorder %s24, 0
    %p150 = por %p148, %p149
    %p151 = scmp.ne.s32.totalorder %s139, %s140
    %p152 = scmp.eq.s32.totalorder %s25, 1
    %p153 = por %p151, %p152
    %p155 = scmp.ne.s32.totalorder %s140, %s154
    %p156 = scmp.eq.s32.totalorder %s25, 0
    %p157 = por %p155, %p156
    %s159 = sadd.s32 %s158, 1
    %p162 = scmp.eq.s32.totalorder %s19, 1
    %p163 = scmp.ne.s32.totalorder %s158, %s160
    %p164 = scmp.eq.s32.totalorder %s19, 0
    %p165 = por %p163, %p164
    %p166 = scmp.ne.s32.totalorder %s158, %s160
    %p167 = scmp.eq.s32.totalorder %s24, 1
    %p168 = por %p166, %p167
    %p169 = scmp.ne.s32.totalorder %s160, %s161
    %p170 = scmp.eq.s32.totalorder %s24, 0
    %p171 = por %p169, %p170
    %p172 = scmp.ne.s32.totalorder %s160, %s161
    %p173 = scmp.eq.s32.totalorder %s25, 1
    %p174 = por %p172, %p173
    %p176 = scmp.ne.s32.totalorder %s161, %s175
    %p177 = scmp.eq.s32.totalorder %s25, 0
    %p178 = por %p176, %p177
    %s180 = sadd.s32 %s179, 1
    %p183 = scmp.eq.s32.totalorder %s19, 1
    %p184 = scmp.ne.s32.totalorder %s179, %s181
    %p185 = scmp.eq.s32.totalorder %s19, 0
    %p186 = por %p184, %p185
    %p187 = scmp.ne.s32.totalorder %s179, %s181
    %p188 = scmp.eq.s32.totalorder %s24, 1
    %p189 = por %p187, %p188
    %p190 = scmp.ne.s32.totalorder %s181, %s182
    %p191 = scmp.eq.s32.totalorder %s24, 0
    %p192 = por %p190, %p191
    %p193 = scmp.ne.s32.totalorder %s181, %s182
    %p194 = scmp.eq.s32.totalorder %s25, 1
    %p195 = por %p193, %p194
    %p197 = scmp.ne.s32.totalorder %s182, %s196
    %p198 = scmp.eq.s32.totalorder %s25, 0
    %p199 = por %p197, %p198
    %s201 = sadd.s32 %s200, 1
    %p204 = scmp.eq.s32.totalorder %s19, 1
    %p205 = scmp.ne.s32.totalorder %s200, %s202
    %p206 = scmp.eq.s32.totalorder %s19, 0
    %p207 = por %p205, %p206
    %p208 = scmp.ne.s32.totalorder %s200, %s202
    %p209 = scmp.eq.s32.totalorder %s24, 1
    %p210 = por %p208, %p209
    %p211 = scmp.ne.s32.totalorder %s202, %s203
    %p212 = scmp.eq.s32.totalorder %s24, 0
    %p213 = por %p211, %p212
    %p214 = scmp.ne.s32.totalorder %s202, %s203
    %p215 = scmp.eq.s32.totalorder %s25, 1
    %p216 = por %p214, %p215
    %p218 = scmp.ne.s32.totalorder %s203, %s217
    %p219 = scmp.eq.s32.totalorder %s25, 0
    %p220 = por %p218, %p219
    %s222 = sadd.s32 %s221, 1
    %p225 = scmp.eq.s32.totalorder %s19, 1
    %p226 = scmp.ne.s32.totalorder %s221, %s223
    %p227 = scmp.eq.s32.totalorder %s19, 0
    %p228 = por %p226, %p227
    %p229 = scmp.ne.s32.totalorder %s221, %s223
    %p230 = scmp.eq.s32.totalorder %s24, 1
    %p231 = por %p229, %p230
    %p232 = scmp.ne.s32.totalorder %s223, %s224
    %p233 = scmp.eq.s32.totalorder %s24, 0
    %p234 = por %p232, %p233
    %p235 = scmp.ne.s32.totalorder %s223, %s224
    %p236 = scmp.eq.s32.totalorder %s25, 1
    %p237 = por %p235, %p236
    %p239 = scmp.ne.s32.totalorder %s224, %s238
    %p240 = scmp.eq.s32.totalorder %s25, 0
    %p241 = por %p239, %p240
    %s243 = sadd.s32 %s242, 1
    %p246 = scmp.eq.s32.totalorder %s19, 1
    %p247 = scmp.ne.s32.totalorder %s242, %s244
    %p248 = scmp.eq.s32.totalorder %s19, 0
    %p249 = por %p247, %p248
    %p250 = scmp.ne.s32.totalorder %s242, %s244
    %p251 = scmp.eq.s32.totalorder %s24, 1
    %p252 = por %p250, %p251
    %p253 = scmp.ne.s32.totalorder %s244, %s245
    %p254 = scmp.eq.s32.totalorder %s24, 0
    %p255 = por %p253, %p254
    %p256 = scmp.ne.s32.totalorder %s244, %s245
    %p257 = scmp.eq.s32.totalorder %s25, 1
    %p258 = por %p256, %p257
    %p260 = scmp.ne.s32.totalorder %s245, %s259
    %p261 = scmp.eq.s32.totalorder %s25, 0
    %p262 = por %p260, %p261
    %s264 = sadd.s32 %s263, 1
    %p267 = scmp.eq.s32.totalorder %s19, 1
    %p268 = scmp.ne.s32.totalorder %s263, %s265
    %p269 = scmp.eq.s32.totalorder %s19, 0
    %p270 = por %p268, %p269
    %p271 = scmp.ne.s32.totalorder %s263, %s265
    %p272 = scmp.eq.s32.totalorder %s24, 1
    %p273 = por %p271, %p272
    %p274 = scmp.ne.s32.totalorder %s265, %s266
    %p275 = scmp.eq.s32.totalorder %s24, 0
    %p276 = por %p274, %p275
    %p277 = scmp.ne.s32.totalorder %s265, %s266
    %p278 = scmp.eq.s32.totalorder %s25, 1
    %p279 = por %p277, %p278
    %p281 = scmp.ne.s32.totalorder %s266, %s280
    %p282 = scmp.eq.s32.totalorder %s25, 0
    %p283 = por %p281, %p282
    %s285 = sadd.s32 %s284, 1
    %p288 = scmp.eq.s32.totalorder %s19, 1
    %p289 = scmp.ne.s32.totalorder %s284, %s286
    %p290 = scmp.eq.s32.totalorder %s19, 0
    %p291 = por %p289, %p290
    %p292 = scmp.ne.s32.totalorder %s284, %s286
    %p293 = scmp.eq.s32.totalorder %s24, 1
    %p294 = por %p292, %p293
    %p295 = scmp.ne.s32.totalorder %s286, %s287
    %p296 = scmp.eq.s32.totalorder %s24, 0
    %p297 = por %p295, %p296
    %p298 = scmp.ne.s32.totalorder %s286, %s287
    %p299 = scmp.eq.s32.totalorder %s25, 1
    %p300 = por %p298, %p299
    %p302 = scmp.ne.s32.totalorder %s287, %s301
    %p303 = scmp.eq.s32.totalorder %s25, 0
    %p304 = por %p302, %p303
    %s305 = ssub.s32 %s19, %s26
    %p306 = scmp.eq.s32.totalorder %s305, 0
    %s308 = sadd.s32 %s307, 1
    %s309 = scalar_select %p306, %s307, %s308
    %p312 = pneg %p306
    %p313 = scmp.eq.s32.totalorder %s19, 1
    %p314 = por %p312, %p313
    %p315 = scmp.ne.s32.totalorder %s307, %s310
    %p316 = scmp.eq.s32.totalorder %s19, 0
    %p317 = por %p315, %p316
    %p318 = scmp.ne.s32.totalorder %s307, %s310
    %p319 = scmp.eq.s32.totalorder %s24, 1
    %p320 = por %p318, %p319
    %p321 = scmp.ne.s32.totalorder %s310, %s311
    %p322 = scmp.eq.s32.totalorder %s24, 0
    %p323 = por %p321, %p322
    %p324 = scmp.ne.s32.totalorder %s310, %s311
    %p325 = scmp.eq.s32.totalorder %s25, 1
    %p326 = por %p324, %p325
    %p328 = scmp.ne.s32.totalorder %s311, %s327
    %p329 = scmp.eq.s32.totalorder %s25, 0
    %p330 = por %p328, %p329
    %p331 = scmp.le.s32.totalorder 1, %s19
    %p332 = scmp.lt.s32.totalorder %s19, 3
    %p333 = pnand %p331, %p332
    %p334 = pneg %p333
    // Predicated region
    $region9: #{transformer_forward.5} parent=5 // pred_check
      _
    $region10: #{transformer_forward.5} parent=5 // pred_check_branch
      %336 = sbr.rel (%p333) target = $region12
    $region11: #{transformer_forward.5} parent=5 // pred_region
      %s337 = ssub.s32 %s19, 1
      // Predicated region
      $region13: #{transformer_forward.5} parent=11 // pred_check
        %p338 = pneg %p66
      $region14: #{transformer_forward.5} parent=11 // pred_check_branch
        %340 = sbr.rel (%p338) target = $region16
      $region15: #{transformer_forward.5} parent=11 // pred_region
        _
      $region16: #{transformer_forward.5} parent=11 // pred_fallthru
        _
      // Predicated region
      $region17: #{transformer_forward.5} parent=11 // pred_check
        %p341 = pneg %p87
      $region18: #{transformer_forward.5} parent=11 // pred_check_branch
        %343 = sbr.rel (%p341) target = $region20
      $region19: #{transformer_forward.5} parent=11 // pred_region
        _
      $region20: #{transformer_forward.5} parent=11 // pred_fallthru
        _
      // Predicated region
      $region21: #{transformer_forward.5} parent=11 // pred_check
        %p344 = pneg %p108
      $region22: #{transformer_forward.5} parent=11 // pred_check_branch
        %346 = sbr.rel (%p344) target = $region24
      $region23: #{transformer_forward.5} parent=11 // pred_region
        _
      $region24: #{transformer_forward.5} parent=11 // pred_fallthru
        _
      // Predicated region
      $region25: #{transformer_forward.5} parent=11 // pred_check
        %p347 = pneg %p129
      $region26: #{transformer_forward.5} parent=11 // pred_check_branch
        %349 = sbr.rel (%p347) target = $region28
      $region27: #{transformer_forward.5} parent=11 // pred_region
        _
      $region28: #{transformer_forward.5} parent=11 // pred_fallthru
        _
      // Predicated region
      $region29: #{transformer_forward.5} parent=11 // pred_check
        %p350 = pneg %p150
      $region30: #{transformer_forward.5} parent=11 // pred_check_branch
        %352 = sbr.rel (%p350) target = $region32
      $region31: #{transformer_forward.5} parent=11 // pred_region
        _
      $region32: #{transformer_forward.5} parent=11 // pred_fallthru
        _
      // Predicated region
      $region33: #{transformer_forward.5} parent=11 // pred_check
        %p353 = pneg %p171
      $region34: #{transformer_forward.5} parent=11 // pred_check_branch
        %355 = sbr.rel (%p353) target = $region36
      $region35: #{transformer_forward.5} parent=11 // pred_region
        _
      $region36: #{transformer_forward.5} parent=11 // pred_fallthru
        _
      // Predicated region
      $region37: #{transformer_forward.5} parent=11 // pred_check
        %p356 = pneg %p192
      $region38: #{transformer_forward.5} parent=11 // pred_check_branch
        %358 = sbr.rel (%p356) target = $region40
      $region39: #{transformer_forward.5} parent=11 // pred_region
        _
      $region40: #{transformer_forward.5} parent=11 // pred_fallthru
        _
      // Predicated region
      $region41: #{transformer_forward.5} parent=11 // pred_check
        %p359 = pneg %p213
      $region42: #{transformer_forward.5} parent=11 // pred_check_branch
        %361 = sbr.rel (%p359) target = $region44
      $region43: #{transformer_forward.5} parent=11 // pred_region
        _
      $region44: #{transformer_forward.5} parent=11 // pred_fallthru
        _
      // Predicated region
      $region45: #{transformer_forward.5} parent=11 // pred_check
        %p362 = pneg %p234
      $region46: #{transformer_forward.5} parent=11 // pred_check_branch
        %364 = sbr.rel (%p362) target = $region48
      $region47: #{transformer_forward.5} parent=11 // pred_region
        _
      $region48: #{transformer_forward.5} parent=11 // pred_fallthru
        _
      // Predicated region
      $region49: #{transformer_forward.5} parent=11 // pred_check
        %p365 = pneg %p255
      $region50: #{transformer_forward.5} parent=11 // pred_check_branch
        %367 = sbr.rel (%p365) target = $region52
      $region51: #{transformer_forward.5} parent=11 // pred_region
        _
      $region52: #{transformer_forward.5} parent=11 // pred_fallthru
        _
      // Predicated region
      $region53: #{transformer_forward.5} parent=11 // pred_check
        %p368 = pneg %p276
      $region54: #{transformer_forward.5} parent=11 // pred_check_branch
        %370 = sbr.rel (%p368) target = $region56
      $region55: #{transformer_forward.5} parent=11 // pred_region
        _
      $region56: #{transformer_forward.5} parent=11 // pred_fallthru
        _
      // Predicated region
      $region57: #{transformer_forward.5} parent=11 // pred_check
        %p371 = pneg %p297
      $region58: #{transformer_forward.5} parent=11 // pred_check_branch
        %373 = sbr.rel (%p371) target = $region60
      $region59: #{transformer_forward.5} parent=11 // pred_region
        _
      $region60: #{transformer_forward.5} parent=11 // pred_fallthru
        _
    $region12: #{transformer_forward.5} parent=5 // pred_fallthru
      _
    %p374 = scmp.lt.s32.totalorder %s19, 2
    // Predicated region
    $region61: #{transformer_forward.5} parent=5 // pred_check
      %p375 = pneg %p374
    $region62: #{transformer_forward.5} parent=5 // pred_check_branch
      %377 = sbr.rel (%p375) target = $region64
    $region63: #{transformer_forward.5} parent=5 // pred_region
      // Predicated region
      $region65: #{transformer_forward.5} parent=63 // pred_check
        %p378 = pneg %p39
      $region66: #{transformer_forward.5} parent=63 // pred_check_branch
        %380 = sbr.rel (%p378) target = $region68
      $region67: #{transformer_forward.5} parent=63 // pred_region
        %p381 = scmp.lt.s32.totalorder %s19, 1
        %s382 = scalar_select %p381, %s19, 1
        %s383 = smul.addr %s382, 2
        %s384 = smul.addr %s383, 8
        %s385 = scalar_lea.vmem %s0, %s384
      $region68: #{transformer_forward.5} parent=63 // pred_fallthru
        _
    $region64: #{transformer_forward.5} parent=5 // pred_fallthru
      _
    %p386 = scmp.le.s32.totalorder 1, %s19
    %p387 = scmp.lt.s32.totalorder %s19, 3
    %p388 = pnand %p386, %p387
    %p389 = pneg %p388
    // Predicated region
    $region69: #{transformer_forward.5} parent=5 // pred_check
      _
    $region70: #{transformer_forward.5} parent=5 // pred_check_branch
      %391 = sbr.rel (%p388) target = $region72
    $region71: #{transformer_forward.5} parent=5 // pred_region
      %s392 = ssub.s32 %s19, 1
      %p393 = scmp.lt.s32.totalorder %s24, 1
      %s394 = scalar_select %p393, %s24, 1
      %s395 = smul.addr %s394, 2
      %s396 = smul.addr %s395, 8
      %s397 = scalar_lea.vmem %s0, %s396
      %p398 = pneg %p45
      %p399 = pneg %p42
      %p400 = pneg %p66
      %p401 = pneg %p63
      %p402 = pneg %p87
      %p403 = pneg %p84
      %p404 = pneg %p108
      %p405 = pneg %p105
      %p406 = pneg %p129
      %p407 = pneg %p126
      %p408 = pneg %p150
      %p409 = pneg %p147
      %p410 = pneg %p171
      %p411 = pneg %p168
      %p412 = pneg %p192
      %p413 = pneg %p189
      %p414 = pneg %p213
      %p415 = pneg %p210
      %p416 = pneg %p234
      %p417 = pneg %p231
      %p418 = pneg %p255
      %p419 = pneg %p252
      %p420 = pneg %p276
      %p421 = pneg %p273
      %p422 = pneg %p297
      %p423 = pneg %p294
      %p424 = pneg %p323
      %p425 = pneg %p320
      %p426 = scmp.lt.s32.totalorder %s24, 1
      %s427 = scalar_select %p426, %s24, 1
      %s428 = smul.addr %s427, 2
      %s429 = smul.addr %s428, 8
      %s430 = scalar_lea.vmem %s13, %s429
      %p431 = scmp.lt.s32.totalorder %s24, 1
      %s432 = scalar_select %p431, %s24, 1
      %s433 = smul.addr %s432, 2
      %s434 = smul.addr %s433, 8
      %s435 = scalar_lea.vmem %s0, %s434
      %p436 = scmp.lt.s32.totalorder %s24, 1
      %s437 = scalar_select %p436, %s24, 1
      %s438 = smul.addr %s437, 2
      %s439 = smul.addr %s438, 8
      %s440 = scalar_lea.vmem %s13, %s439
      %v442 = vld [vmem:[%s435] sm:$0xff]
      %v443 = vld [vmem:[%s435 + $0x8] sm:$0xff]
      %v444 = vld [vmem:[%s1] sm:$0x1]
      %v445 = vld [vmem:[%s2] sm:$0x1]
      %vm446 = vcmask 261120
      %v447 = vsel %vm446, %v442, 0.0
      %448 = vadd.xlane.f32.xlu0 %v447
      %v449 = vpop.xlane.xlu0 %448
      %v450 = vsel %vm446, %v443, 0.0
      %451 = vadd.xlane.f32.xlu0 %v450
      %v452 = vpop.xlane.xlu0 %451
      %v453 = vrcp.pop 32.0
      %v454 = vmul.f32 %v449, %v453
      %v455 = vmul.f32 %v452, %v453
      %v456 = vsub.f32 %v442, %v454
      %v457 = vsub.f32 %v443, %v455
      %v458 = vmul.f32 %v456, %v456
      %v459 = vmul.f32 %v457, %v457
      %v460 = vsel %vm446, %v458, 0.0
      %461 = vadd.xlane.f32.xlu0 %v460
      %v462 = vpop.xlane.xlu0 %461
      %v463 = vsel %vm446, %v459, 0.0
      %464 = vadd.xlane.f32.xlu0 %v463
      %v465 = vpop.xlane.xlu0 %464
      %v466 = vmul.f32 %v462, %v453
      %v467 = vmul.f32 %v465, %v453
      %v468 = vadd.f32 %v466, 1e-05
      %v469 = vadd.f32 %v467, 1e-05
      %v470 = vrsqrt.pop %v468
      %v471 = vrsqrt.pop %v469
      %v472 = vmul.f32 %v456, %v470
      %v473 = vmul.f32 %v457, %v471
      %v475 = vlaneseq
      %v476 = vshrl.u32 %v475, 7
      %v477 = vsub.s32 0, %v476
      %v478 = vrot.slane %v444, %v477
      %v480 = vmul.f32 %v472, %v478
      %v481 = vmul.f32 %v473, %v478
      %v483 = vlaneseq
      %v484 = vshrl.u32 %v483, 7
      %v485 = vsub.s32 0, %v484
      %v486 = vrot.slane %v445, %v485
      %v488 = vadd.f32 %v480, %v486
      %v489 = vadd.f32 %v481, %v486
      %v490 = vpack.c.bf16 %v489, %v488
      %v491 = vld [vmem:[%s3] sm:$0xf]
      %v492 = vld [vmem:[%s3 + $0x4] sm:$0xf]
      %v493 = vld [vmem:[%s3 + $0x8] sm:$0xf]
      %v494 = vld [vmem:[%s3 + $0xc] sm:$0xf]
      %v495 = vld [vmem:[%s4] sm:$0x1]
      %v497 = vlaneseq
      %v498 = vshrl.u32 %v497, 7
      %v499 = vsub.s32 0, %v498
      %v500 = vrot.slane %v495, %v499
      %v506 = vunpack.c.l.b16 %v491
      %v507 = vunpack.c.l.b16 %v492
      %v508 = vunpack.c.l.b16 %v493
      %v509 = vunpack.c.l.b16 %v494
      %v510 = vpack.c.b16 %v507, %v506
      %v511 = vpack.c.b16 %v509, %v508
      %v515 = vsel %vm446, %v490, 0
      %517 = vmatprep.subr.bf16.mxu0 0
      %518 = vmatpush1.bf16.msra.mxu0 %v510
      %519 = vmatprep.subr.bf16.mxu0 0
      %520 = vmatpush1.bf16.msra.mxu0 %v511
      %521 = vmatprep.subr.bf16.mxu0 0
      %522 = vmatpush1.bf16.msra.mxu0 0
      %523 = vmatprep.subr.bf16.mxu0 0
      %524 = vmatpush1.bf16.msra.mxu0 0
      %525 = vmatprep.subr.bf16.mxu0 0
      %526 = vmatpush1.bf16.msra.mxu0 0
      %527 = vmatprep.subr.bf16.mxu0 0
      %528 = vmatpush1.bf16.msra.mxu0 0
      %529 = vmatprep.subr.bf16.mxu0 0
      %530 = vmatpush1.bf16.msra.mxu0 0
      %531 = vmatprep.subr.bf16.mxu0 0
      %532 = vmatpush1.bf16.msra.mxu0 0
      %533 = vmatprep.subr.bf16.mxu0 0
      %534 = vmatpush1.bf16.msra.mxu0 0
      %535 = vmatprep.subr.bf16.mxu0 0
      %536 = vmatpush1.bf16.msra.mxu0 0
      %537 = vmatprep.subr.bf16.mxu0 0
      %538 = vmatpush1.bf16.msra.mxu0 0
      %539 = vmatprep.subr.bf16.mxu0 0
      %540 = vmatpush1.bf16.msra.mxu0 0
      %541 = vmatprep.subr.bf16.mxu0 0
      %542 = vmatpush1.bf16.msra.mxu0 0
      %543 = vmatprep.subr.bf16.mxu0 0
      %544 = vmatpush1.bf16.msra.mxu0 0
      %545 = vmatprep.subr.bf16.mxu0 0
      %546 = vmatpush1.bf16.msra.mxu0 0
      %547 = vmatprep.subr.bf16.mxu0 0
      %548 = vmatpush1.bf16.msra.mxu0 0
      %549 = vmatprep.mubr.bf16.mxu0 0
      %550 = vmatmul.mubr.bf16.gmra.mrb[0].mxu0 %v515
      %v551 = vpop.f32.mrb[0].mxu0
      %v552 = vadd.f32 %v500, %v551
      %v553 = vpop.f32.mrb[0].mxu0
      %v554 = vpop.f32.mrb[0].mxu0
      %v555 = vadd.f32 %v500, %v554
      %v556 = vpop.f32.mrb[0].mxu0
      %557 = vdwg.mxu0
      %v558 = vlaneseq
      %v559 = vshrl.u32 %v558, 7
      %v560 = vadd.s32 %v559, 8
      %v561 = vlaneseq
      %v562 = vand.u32 %v561, 127
      %vm563 = vcmp.le.s32.totalorder %v562, %v559
      %vm564 = vcmp.le.s32.totalorder %v562, %v560
      %v565 = vpack.c.bf16 %v555, %v552
      %567 = vrot.lane.b32.xlu0 %v565, 96
      %v568 = vpop.permute.xlu0 %567
      %vm569 = vcmask 64512
      %v571 = vsel %vm569, %v565, 0
      %v574 = vsel %vm569, %v568, 0
      %576 = vmatprep.subr.bf16.mxu0 0
      %577 = vmatpush1.bf16.xpose.msra.mxu0 %v574
      %578 = vmatprep.subr.bf16.mxu0 0
      %579 = vmatpush1.bf16.xpose.msra.mxu0 0
      %580 = vmatprep.subr.bf16.mxu0 0
      %581 = vmatpush1.bf16.xpose.msra.mxu0 0
      %582 = vmatprep.subr.bf16.mxu0 0
      %583 = vmatpush1.bf16.xpose.msra.mxu0 0
      %584 = vmatprep.subr.bf16.mxu0 0
      %585 = vmatpush1.bf16.xpose.msra.mxu0 0
      %586 = vmatprep.subr.bf16.mxu0 0
      %587 = vmatpush1.bf16.xpose.msra.mxu0 0
      %588 = vmatprep.subr.bf16.mxu0 0
      %589 = vmatpush1.bf16.xpose.msra.mxu0 0
      %590 = vmatprep.subr.bf16.mxu0 0
      %591 = vmatpush1.bf16.xpose.msra.mxu0 0
      %592 = vmatprep.subr.bf16.mxu0 0
      %593 = vmatpush1.bf16.xpose.msra.mxu0 0
      %594 = vmatprep.subr.bf16.mxu0 0
      %595 = vmatpush1.bf16.xpose.msra.mxu0 0
      %596 = vmatprep.subr.bf16.mxu0 0
      %597 = vmatpush1.bf16.xpose.msra.mxu0 0
      %598 = vmatprep.subr.bf16.mxu0 0
      %599 = vmatpush1.bf16.xpose.msra.mxu0 0
      %600 = vmatprep.subr.bf16.mxu0 0
      %601 = vmatpush1.bf16.xpose.msra.mxu0 0
      %602 = vmatprep.subr.bf16.mxu0 0
      %603 = vmatpush1.bf16.xpose.msra.mxu0 0
      %604 = vmatprep.subr.bf16.mxu0 0
      %605 = vmatpush1.bf16.xpose.msra.mxu0 0
      %606 = vmatprep.subr.bf16.mxu0 0
      %607 = vmatpush1.bf16.xpose.msra.mxu0 0
      %608 = vmatprep.mubr.bf16.mxu0 0
      %609 = vmatmul.mubr.bf16.gmra.mrb[0].mxu0 %v571
      %v610 = vpop.f32.mrb[0].mxu0
      %v611 = vadd.f32 0.0, %v610
      %v612 = vpop.f32.mrb[0].mxu0
      %v613 = vpop.f32.mrb[0].mxu0
      %v614 = vadd.f32 0.0, %v613
      %v615 = vpop.f32.mrb[0].mxu0
      %616 = vdwg.mxu0
      %v617 = vsel %vm563, %v611, -1e+30
      %v618 = vsel %vm564, %v614, -1e+30
      %vm619 = vcmask 130048
      %v620 = vsel %vm619, %v617, -inf
      %621 = vmax.xlane.f32.xlu0 %v620
      %v622 = vpop.xlane.xlu0 %621
      %v623 = vsel %vm619, %v618, -inf
      %624 = vmax.xlane.f32.xlu0 %v623
      %v625 = vpop.xlane.xlu0 %624
      %v626 = vsub.f32 %v617, %v622
      %v627 = vsub.f32 %v618, %v625
      %v628 = vmul.f32 %v626, 1.442695
      %v629 = vpow.pop %v628
      %v630 = vmul.f32 %v627, 1.442695
      %v631 = vpow.pop %v630
      %v632 = vsel %vm619, %v629, 0.0
      %633 = vadd.xlane.f32.xlu0 %v632
      %v634 = vpop.xlane.xlu0 %633
      %v635 = vsel %vm619, %v631, 0.0
      %636 = vadd.xlane.f32.xlu0 %v635
      %v637 = vpop.xlane.xlu0 %636
      %v638 = vrcp.pop %v634
      %v639 = vrcp.pop %v637
      %v640 = vmul.f32 %v629, %v638
      %v641 = vmul.f32 %v631, %v639
      %v642 = vpack.c.bf16 %v641, %v640
      %643 = vrot.lane.b32.xlu0 %v565, 64
      %v644 = vpop.permute.xlu0 %643
      %v647 = vsel %vm619, %v642, 0
      %649 = vmatprep.subr.bf16.mxu0 0
      %650 = vmatpush1.bf16.msra.mxu0 %v644
      %651 = vmatprep.subr.bf16.mxu0 0
      %652 = vmatpush1.bf16.msra.mxu0 0
      %653 = vmatprep.subr.bf16.mxu0 0
      %654 = vmatpush1.bf16.msra.mxu0 0
      %655 = vmatprep.subr.bf16.mxu0 0
      %656 = vmatpush1.bf16.msra.mxu0 0
      %657 = vmatprep.subr.bf16.mxu0 0
      %658 = vmatpush1.bf16.msra.mxu0 0
      %659 = vmatprep.subr.bf16.mxu0 0
      %660 = vmatpush1.bf16.msra.mxu0 0
      %661 = vmatprep.subr.bf16.mxu0 0
      %662 = vmatpush1.bf16.msra.mxu0 0
      %663 = vmatprep.subr.bf16.mxu0 0
      %664 = vmatpush1.bf16.msra.mxu0 0
      %665 = vmatprep.subr.bf16.mxu0 0
      %666 = vmatpush1.bf16.msra.mxu0 0
      %667 = vmatprep.subr.bf16.mxu0 0
      %668 = vmatpush1.bf16.msra.mxu0 0
      %669 = vmatprep.subr.bf16.mxu0 0
      %670 = vmatpush1.bf16.msra.mxu0 0
      %671 = vmatprep.subr.bf16.mxu0 0
      %672 = vmatpush1.bf16.msra.mxu0 0
      %673 = vmatprep.subr.bf16.mxu0 0
      %674 = vmatpush1.bf16.msra.mxu0 0
      %675 = vmatprep.subr.bf16.mxu0 0
      %676 = vmatpush1.bf16.msra.mxu0 0
      %677 = vmatprep.subr.bf16.mxu0 0
      %678 = vmatpush1.bf16.msra.mxu0 0
      %679 = vmatprep.subr.bf16.mxu0 0
      %680 = vmatpush1.bf16.msra.mxu0 0
      %681 = vmatprep.mubr.bf16.mxu0 0
      %682 = vmatmul.mubr.bf16.gmra.mrb[0].mxu0 %v647
      %v683 = vpop.f32.mrb[0].mxu0
      %v684 = vadd.f32 0.0, %v683
      %v685 = vpop.f32.mrb[0].mxu0
      %v686 = vpop.f32.mrb[0].mxu0
      %v687 = vadd.f32 0.0, %v686
      %v688 = vpop.f32.mrb[0].mxu0
      %689 = vdwg.mxu0
      %690 = vst.msk [vmem:[#allocation2] sm:$0xff] %vm569, %v684
      %691 = vst.msk [vmem:[#allocation2 + $0x8] sm:$0xff] %vm569, %v687
      %692 = vrot.lane.b32.xlu0 %v565, 120
      %v693 = vpop.permute.xlu0 %692
      %694 = vrot.lane.b32.xlu0 %v565, 88
      %v695 = vpop.permute.xlu0 %694
      %v697 = vsel %vm569, %v693, 0
      %v700 = vsel %vm569, %v695, 0
      %702 = vmatprep.subr.bf16.mxu0 0
      %703 = vmatpush1.bf16.xpose.msra.mxu0 %v700
      %704 = vmatprep.subr.bf16.mxu0 0
      %705 = vmatpush1.bf16.xpose.msra.mxu0 0
      %706 = vmatprep.subr.bf16.mxu0 0
      %707 = vmatpush1.bf16.xpose.msra.mxu0 0
      %708 = vmatprep.subr.bf16.mxu0 0
      %709 = vmatpush1.bf16.xpose.msra.mxu0 0
      %710 = vmatprep.subr.bf16.mxu0 0
      %711 = vmatpush1.bf16.xpose.msra.mxu0 0
      %712 = vmatprep.subr.bf16.mxu0 0
      %713 = vmatpush1.bf16.xpose.msra.mxu0 0
      %714 = vmatprep.subr.bf16.mxu0 0
      %715 = vmatpush1.bf16.xpose.msra.mxu0 0
      %716 = vmatprep.subr.bf16.mxu0 0
      %717 = vmatpush1.bf16.xpose.msra.mxu0 0
      %718 = vmatprep.subr.bf16.mxu0 0
      %719 = vmatpush1.bf16.xpose.msra.mxu0 0
      %720 = vmatprep.subr.bf16.mxu0 0
      %721 = vmatpush1.bf16.xpose.msra.mxu0 0
      %722 = vmatprep.subr.bf16.mxu0 0
      %723 = vmatpush1.bf16.xpose.msra.mxu0 0
      %724 = vmatprep.subr.bf16.mxu0 0
      %725 = vmatpush1.bf16.xpose.msra.mxu0 0
      %726 = vmatprep.subr.bf16.mxu0 0
      %727 = vmatpush1.bf16.xpose.msra.mxu0 0
      %728 = vmatprep.subr.bf16.mxu0 0
      %729 = vmatpush1.bf16.xpose.msra.mxu0 0
      %730 = vmatprep.subr.bf16.mxu0 0
      %731 = vmatpush1.bf16.xpose.msra.mxu0 0
      %732 = vmatprep.subr.bf16.mxu0 0
      %733 = vmatpush1.bf16.xpose.msra.mxu0 0
      %734 = vmatprep.mubr.bf16.mxu0 0
      %735 = vmatmul.mubr.bf16.gmra.mrb[0].mxu0 %v697
      %v736 = vpop.f32.mrb[0].mxu0
      %v737 = vadd.f32 0.0, %v736
      %v738 = vpop.f32.mrb[0].mxu0
      %v739 = vpop.f32.mrb[0].mxu0
      %v740 = vadd.f32 0.0, %v739
      %v741 = vpop.f32.mrb[0].mxu0
      %742 = vdwg.mxu0
      %v743 = vsel %vm563, %v737, -1e+30
      %v744 = vsel %vm564, %v740, -1e+30
      %v745 = vsel %vm619, %v743, -inf
      %746 = vmax.xlane.f32.xlu0 %v745
      %v747 = vpop.xlane.xlu0 %746
      %v748 = vsel %vm619, %v744, -inf
      %749 = vmax.xlane.f32.xlu0 %v748
      %v750 = vpop.xlane.xlu0 %749
      %v751 = vsub.f32 %v743, %v747
      %v752 = vsub.f32 %v744, %v750
      %v753 = vmul.f32 %v751, 1.442695
      %v754 = vpow.pop %v753
      %v755 = vmul.f32 %v752, 1.442695
      %v756 = vpow.pop %v755
      %v757 = vsel %vm619, %v754, 0.0
      %758 = vadd.xlane.f32.xlu0 %v757
      %v759 = vpop.xlane.xlu0 %758
      %v760 = vsel %vm619, %v756, 0.0
      %761 = vadd.xlane.f32.xlu0 %v760
      %v762 = vpop.xlane.xlu0 %761
      %v763 = vrcp.pop %v759
      %v764 = vrcp.pop %v762
      %v765 = vmul.f32 %v754, %v763
      %v766 = vmul.f32 %v756, %v764
      %v767 = vpack.c.bf16 %v766, %v765
      %768 = vrot.lane.b32.xlu0 %v565, 56
      %v769 = vpop.permute.xlu0 %768
      %v772 = vsel %vm619, %v767, 0
      %774 = vmatprep.subr.bf16.mxu0 0
      %775 = vmatpush1.bf16.msra.mxu0 %v769
      %776 = vmatprep.subr.bf16.mxu0 0
      %777 = vmatpush1.bf16.msra.mxu0 0
      %778 = vmatprep.subr.bf16.mxu0 0
      %779 = vmatpush1.bf16.msra.mxu0 0
      %780 = vmatprep.subr.bf16.mxu0 0
      %781 = vmatpush1.bf16.msra.mxu0 0
      %782 = vmatprep.subr.bf16.mxu0 0
      %783 = vmatpush1.bf16.msra.mxu0 0
      %784 = vmatprep.subr.bf16.mxu0 0
      %785 = vmatpush1.bf16.msra.mxu0 0
      %786 = vmatprep.subr.bf16.mxu0 0
      %787 = vmatpush1.bf16.msra.mxu0 0
      %788 = vmatprep.subr.bf16.mxu0 0
      %789 = vmatpush1.bf16.msra.mxu0 0
      %790 = vmatprep.subr.bf16.mxu0 0
      %791 = vmatpush1.bf16.msra.mxu0 0
      %792 = vmatprep.subr.bf16.mxu0 0
      %793 = vmatpush1.bf16.msra.mxu0 0
      %794 = vmatprep.subr.bf16.mxu0 0
      %795 = vmatpush1.bf16.msra.mxu0 0
      %796 = vmatprep.subr.bf16.mxu0 0
      %797 = vmatpush1.bf16.msra.mxu0 0
      %798 = vmatprep.subr.bf16.mxu0 0
      %799 = vmatpush1.bf16.msra.mxu0 0
      %800 = vmatprep.subr.bf16.mxu0 0
      %801 = vmatpush1.bf16.msra.mxu0 0
      %802 = vmatprep.subr.bf16.mxu0 0
      %803 = vmatpush1.bf16.msra.mxu0 0
      %804 = vmatprep.subr.bf16.mxu0 0
      %805 = vmatpush1.bf16.msra.mxu0 0
      %806 = vmatprep.mubr.bf16.mxu0 0
      %807 = vmatmul.mubr.bf16.gmra.mrb[0].mxu0 %v772
      %v808 = vpop.f32.mrb[0].mxu0
      %v809 = vadd.f32 0.0, %v808
      %v810 = vpop.f32.mrb[0].mxu0
      %v811 = vpop.f32.mrb[0].mxu0
      %v812 = vadd.f32 0.0, %v811
      %v813 = vpop.f32.mrb[0].mxu0
      %814 = vdwg.mxu0
      %817 = vrot.lane.b32.xlu0 %v809, 8
      %v818 = vpop.permute.xlu0 %817
      %819 = vrot.lane.b32.xlu0 %v812, 8
      %v820 = vpop.permute.xlu0 %819
      %vm823 = vcmask 130112
      %824 = vst.msk [vmem:[#allocation2] sm:$0xff] %vm823, %v818
      %825 = vst.msk [vmem:[#allocation2 + $0x8] sm:$0xff] %vm823, %v820
      %826 = vrot.lane.b32.xlu0 %v565, 112
      %v827 = vpop.permute.xlu0 %826
      %828 = vrot.lane.b32.xlu0 %v565, 80
      %v829 = vpop.permute.xlu0 %828
      %v831 = vsel %vm569, %v827, 0
      %v834 = vsel %vm569, %v829, 0
      %836 = vmatprep.subr.bf16.mxu0 0
      %837 = vmatpush1.bf16.xpose.msra.mxu0 %v834
      %838 = vmatprep.subr.bf16.mxu0 0
      %839 = vmatpush1.bf16.xpose.msra.mxu0 0
      %840 = vmatprep.subr.bf16.mxu0 0
      %841 = vmatpush1.bf16.xpose.msra.mxu0 0
      %842 = vmatprep.subr.bf16.mxu0 0
      %843 = vmatpush1.bf16.xpose.msra.mxu0 0
      %844 = vmatprep.subr.bf16.mxu0 0
      %845 = vmatpush1.bf16.xpose.msra.mxu0 0
      %846 = vmatprep.subr.bf16.mxu0 0
      %847 = vmatpush1.bf16.xpose.msra.mxu0 0
      %848 = vmatprep.subr.bf16.mxu0 0
      %849 = vmatpush1.bf16.xpose.msra.mxu0 0
      %850 = vmatprep.subr.bf16.mxu0 0
      %851 = vmatpush1.bf16.xpose.msra.mxu0 0
      %852 = vmatprep.subr.bf16.mxu0 0
      %853 = vmatpush1.bf16.xpose.msra.mxu0 0
      %854 = vmatprep.subr.bf16.mxu0 0
      %855 = vmatpush1.bf16.xpose.msra.mxu0 0
      %856 = vmatprep.subr.bf16.mxu0 0
      %857 = vmatpush1.bf16.xpose.msra.mxu0 0
      %858 = vmatprep.subr.bf16.mxu0 0
      %859 = vmatpush1.bf16.xpose.msra.mxu0 0
      %860 = vmatprep.subr.bf16.mxu0 0
      %861 = vmatpush1.bf16.xpose.msra.mxu0 0
      %862 = vmatprep.subr.bf16.mxu0 0
      %863 = vmatpush1.bf16.xpose.msra.mxu0 0
      %864 = vmatprep.subr.bf16.mxu0 0
      %865 = vmatpush1.bf16.xpose.msra.mxu0 0
      %866 = vmatprep.subr.bf16.mxu0 0
      %867 = vmatpush1.bf16.xpose.msra.mxu0 0
      %868 = vmatprep.mubr.bf16.mxu0 0
      %869 = vmatmul.mubr.bf16.gmra.mrb[0].mxu0 %v831
      %v870 = vpop.f32.mrb[0].mxu0
      %v871 = vadd.f32 0.0, %v870
      %v872 = vpop.f32.mrb[0].mxu0
      %v873 = vpop.f32.mrb[0].mxu0
      %v874 = vadd.f32 0.0, %v873
      %v875 = vpop.f32.mrb[0].mxu0
      %876 = vdwg.mxu0
      %v877 = vsel %vm563, %v871, -1e+30
      %v878 = vsel %vm564, %v874, -1e+30
      %v879 = vsel %vm619, %v877, -inf
      %880 = vmax.xlane.f32.xlu0 %v879
      %v881 = vpop.xlane.xlu0 %880
      %v882 = vsel %vm619, %v878, -inf
      %883 = vmax.xlane.f32.xlu0 %v882
      %v884 = vpop.xlane.xlu0 %883
      %v885 = vsub.f32 %v877, %v881
      %v886 = vsub.f32 %v878, %v884
      %v887 = vmul.f32 %v885, 1.442695
      %v888 = vpow.pop %v887
      %v889 = vmul.f32 %v886, 1.442695
      %v890 = vpow.pop %v889
      %v891 = vsel %vm619, %v888, 0.0
      %892 = vadd.xlane.f32.xlu0 %v891
      %v893 = vpop.xlane.xlu0 %892
      %v894 = vsel %vm619, %v890, 0.0
      %895 = vadd.xlane.f32.xlu0 %v894
      %v896 = vpop.xlane.xlu0 %895
      %v897 = vrcp.pop %v893
      %v898 = vrcp.pop %v896
      %v899 = vmul.f32 %v888, %v897
      %v900 = vmul.f32 %v890, %v898
      %v901 = vpack.c.bf16 %v900, %v899
      %902 = vrot.lane.b32.xlu0 %v565, 48
      %v903 = vpop.permute.xlu0 %902
      %v906 = vsel %vm619, %v901, 0
      %908 = vmatprep.subr.bf16.mxu0 0
      %909 = vmatpush1.bf16.msra.mxu0 %v903
      %910 = vmatprep.subr.bf16.mxu0 0
      %911 = vmatpush1.bf16.msra.mxu0 0
      %912 = vmatprep.subr.bf16.mxu0 0
      %913 = vmatpush1.bf16.msra.mxu0 0
      %914 = vmatprep.subr.bf16.mxu0 0
      %915 = vmatpush1.bf16.msra.mxu0 0
      %916 = vmatprep.subr.bf16.mxu0 0
      %917 = vmatpush1.bf16.msra.mxu0 0
      %918 = vmatprep.subr.bf16.mxu0 0
      %919 = vmatpush1.bf16.msra.mxu0 0
      %920 = vmatprep.subr.bf16.mxu0 0
      %921 = vmatpush1.bf16.msra.mxu0 0
      %922 = vmatprep.subr.bf16.mxu0 0
      %923 = vmatpush1.bf16.msra.mxu0 0
      %924 = vmatprep.subr.bf16.mxu0 0
      %925 = vmatpush1.bf16.msra.mxu0 0
      %926 = vmatprep.subr.bf16.mxu0 0
      %927 = vmatpush1.bf16.msra.mxu0 0
      %928 = vmatprep.subr.bf16.mxu0 0
      %929 = vmatpush1.bf16.msra.mxu0 0
      %930 = vmatprep.subr.bf16.mxu0 0
      %931 = vmatpush1.bf16.msra.mxu0 0
      %932 = vmatprep.subr.bf16.mxu0 0
      %933 = vmatpush1.bf16.msra.mxu0 0
      %934 = vmatprep.subr.bf16.mxu0 0
      %935 = vmatpush1.bf16.msra.mxu0 0
      %936 = vmatprep.subr.bf16.mxu0 0
      %937 = vmatpush1.bf16.msra.mxu0 0
      %938 = vmatprep.subr.bf16.mxu0 0
      %939 = vmatpush1.bf16.msra.mxu0 0
      %940 = vmatprep.mubr.bf16.mxu0 0
      %941 = vmatmul.mubr.bf16.gmra.mrb[0].mxu0 %v906
      %v942 = vpop.f32.mrb[0].mxu0
      %v943 = vadd.f32 0.0, %v942
      %v944 = vpop.f32.mrb[0].mxu0
      %v945 = vpop.f32.mrb[0].mxu0
      %v946 = vadd.f32 0.0, %v945
      %v947 = vpop.f32.mrb[0].mxu0
      %948 = vdwg.mxu0
      %951 = vrot.lane.b32.xlu0 %v943, 16
      %v952 = vpop.permute.xlu0 %951
      %953 = vrot.lane.b32.xlu0 %v946, 16
      %v954 = vpop.permute.xlu0 %953
      %vm957 = vcmask 195712
      %958 = vst.msk [vmem:[#allocation2] sm:$0xff] %vm957, %v952
      %959 = vst.msk [vmem:[#allocation2 + $0x8] sm:$0xff] %vm957, %v954
      %960 = vrot.lane.b32.xlu0 %v565, 104
      %v961 = vpop.permute.xlu0 %960
      %962 = vrot.lane.b32.xlu0 %v565, 72
      %v963 = vpop.permute.xlu0 %962
      %v965 = vsel %vm569, %v961, 0
      %v968 = vsel %vm569, %v963, 0
      %970 = vmatprep.subr.bf16.mxu0 0
      %971 = vmatpush1.bf16.xpose.msra.mxu0 %v968
      %972 = vmatprep.subr.bf16.mxu0 0
      %973 = vmatpush1.bf16.xpose.msra.mxu0 0
      %974 = vmatprep.subr.bf16.mxu0 0
      %975 = vmatpush1.bf16.xpose.msra.mxu0 0
      %976 = vmatprep.subr.bf16.mxu0 0
      %977 = vmatpush1.bf16.xpose.msra.mxu0 0
      %978 = vmatprep.subr.bf16.mxu0 0
      %979 = vmatpush1.bf16.xpose.msra.mxu0 0
      %980 = vmatprep.subr.bf16.mxu0 0
      %981 = vmatpush1.bf16.xpose.msra.mxu0 0
      %982 = vmatprep.subr.bf16.mxu0 0
      %983 = vmatpush1.bf16.xpose.msra.mxu0 0
      %984 = vmatprep.subr.bf16.mxu0 0
      %985 = vmatpush1.bf16.xpose.msra.mxu0 0
      %986 = vmatprep.subr.bf16.mxu0 0
      %987 = vmatpush1.bf16.xpose.msra.mxu0 0
      %988 = vmatprep.subr.bf16.mxu0 0
      %989 = vmatpush1.bf16.xpose.msra.mxu0 0
      %990 = vmatprep.subr.bf16.mxu0 0
      %991 = vmatpush1.bf16.xpose.msra.mxu0 0
      %992 = vmatprep.subr.bf16.mxu0 0
      %993 = vmatpush1.bf16.xpose.msra.mxu0 0
      %994 = vmatprep.subr.bf16.mxu0 0
      %995 = vmatpush1.bf16.xpose.msra.mxu0 0
      %996 = vmatprep.subr.bf16.mxu0 0
      %997 = vmatpush1.bf16.xpose.msra.mxu0 0
      %998 = vmatprep.subr.bf16.mxu0 0
      %999 = vmatpush1.bf16.xpose.msra.mxu0 0
      %1000 = vmatprep.subr.bf16.mxu0 0
      %1001 = vmatpush1.bf16.xpose.msra.mxu0 0
      %1002 = vmatprep.mubr.bf16.mxu0 0
      %1003 = vmatmul.mubr.bf16.gmra.mrb[0].mxu0 %v965
      %v1004 = vpop.f32.mrb[0].mxu0
      %v1005 = vadd.f32 0.0, %v1004
      %v1006 = vpop.f32.mrb[0].mxu0
      %v1007 = vpop.f32.mrb[0].mxu0
      %v1008 = vadd.f32 0.0, %v1007
      %v1009 = vpop.f32.mrb[0].mxu0
      %1010 = vdwg.mxu0
      %v1011 = vsel %vm563, %v1005, -1e+30
      %v1012 = vsel %vm564, %v1008, -1e+30
      %v1013 = vsel %vm619, %v1011, -inf
      %1014 = vmax.xlane.f32.xlu0 %v1013
      %v1015 = vpop.xlane.xlu0 %1014
      %v1016 = vsel %vm619, %v1012, -inf
      %1017 = vmax.xlane.f32.xlu0 %v1016
      %v1018 = vpop.xlane.xlu0 %1017
      %v1019 = vsub.f32 %v1011, %v1015
      %v1020 = vsub.f32 %v1012, %v1018
      %v1021 = vmul.f32 %v1019, 1.442695
      %v1022 = vpow.pop %v1021
      %v1023 = vmul.f32 %v1020, 1.442695
      %v1024 = vpow.pop %v1023
      %v1025 = vsel %vm619, %v1022, 0.0
      %1026 = vadd.xlane.f32.xlu0 %v1025
      %v1027 = vpop.xlane.xlu0 %1026
      %v1028 = vsel %vm619, %v1024, 0.0
      %1029 = vadd.xlane.f32.xlu0 %v1028
      %v1030 = vpop.xlane.xlu0 %1029
      %v1031 = vrcp.pop %v1027
      %v1032 = vrcp.pop %v1030
      %v1033 = vmul.f32 %v1022, %v1031
      %v1034 = vmul.f32 %v1024, %v1032
      %v1035 = vpack.c.bf16 %v1034, %v1033
      %1036 = vrot.lane.b32.xlu0 %v565, 40
      %v1037 = vpop.permute.xlu0 %1036
      %v1040 = vsel %vm619, %v1035, 0
      %1042 = vmatprep.subr.bf16.mxu0 0
      %1043 = vmatpush1.bf16.msra.mxu0 %v1037
      %1044 = vmatprep.subr.bf16.mxu0 0
      %1045 = vmatpush1.bf16.msra.mxu0 0
      %1046 = vmatprep.subr.bf16.mxu0 0
      %1047 = vmatpush1.bf16.msra.mxu0 0
      %1048 = vmatprep.subr.bf16.mxu0 0
      %1049 = vmatpush1.bf16.msra.mxu0 0
      %1050 = vmatprep.subr.bf16.mxu0 0
      %1051 = vmatpush1.bf16.msra.mxu0 0
      %1052 = vmatprep.subr.bf16.mxu0 0
      %1053 = vmatpush1.bf16.msra.mxu0 0
      %1054 = vmatprep.subr.bf16.mxu0 0
      %1055 = vmatpush1.bf16.msra.mxu0 0
      %1056 = vmatprep.subr.bf16.mxu0 0
      %1057 = vmatpush1.bf16.msra.mxu0 0
      %1058 = vmatprep.subr.bf16.mxu0 0
      %1059 = vmatpush1.bf16.msra.mxu0 0
      %1060 = vmatprep.subr.bf16.mxu0 0
      %1061 = vmatpush1.bf16.msra.mxu0 0
      %1062 = vmatprep.subr.bf16.mxu0 0
      %1063 = vmatpush1.bf16.msra.mxu0 0
      %1064 = vmatprep.subr.bf16.mxu0 0
      %1065 = vmatpush1.bf16.msra.mxu0 0
      %1066 = vmatprep.subr.bf16.mxu0 0
      %1067 = vmatpush1.bf16.msra.mxu0 0
      %1068 = vmatprep.subr.bf16.mxu0 0
      %1069 = vmatpush1.bf16.msra.mxu0 0
      %1070 = vmatprep.subr.bf16.mxu0 0
      %1071 = vmatpush1.bf16.msra.mxu0 0
      %1072 = vmatprep.subr.bf16.mxu0 0
      %1073 = vmatpush1.bf16.msra.mxu0 0
      %1074 = vmatprep.mubr.bf16.mxu0 0
      %1075 = vmatmul.mubr.bf16.gmra.mrb[0].mxu0 %v1040
      %v1076 = vpop.f32.mrb[0].mxu0
      %v1077 = vadd.f32 0.0, %v1076
      %v1078 = vpop.f32.mrb[0].mxu0
      %v1079 = vpop.f32.mrb[0].mxu0
      %v1080 = vadd.f32 0.0, %v1079
      %v1081 = vpop.f32.mrb[0].mxu0
      %1082 = vdwg.mxu0
      %1085 = vrot.lane.b32.xlu0 %v1077, 24
      %v1086 = vpop.permute.xlu0 %1085
      %1087 = vrot.lane.b32.xlu0 %v1080, 24
      %v1088 = vpop.permute.xlu0 %1087
      %vm1091 = vcmask 261312
      %1092 = vst.msk [vmem:[#allocation2] sm:$0xff] %vm1091, %v1086
      %1093 = vst.msk [vmem:[#allocation2 + $0x8] sm:$0xff] %vm1091, %v1088
      %v1094 = vld [vmem:[#allocation2] sm:$0xff]
      %v1095 = vld [vmem:[#allocation2 + $0x8] sm:$0xff]
      %v1096 = vpack.c.bf16 %v1095, %v1094
      %v1097 = vld [vmem:[%s5] sm:$0xf]
      %v1098 = vld [vmem:[%s5 + $0x4] sm:$0xf]
      %v1099 = vld [vmem:[%s5 + $0x8] sm:$0xf]
      %v1100 = vld [vmem:[%s5 + $0xc] sm:$0xf]
      %v1101 = vld [vmem:[%s6] sm:$0x1]
      %v1103 = vlaneseq
      %v1104 = vshrl.u32 %v1103, 7
      %v1105 = vsub.s32 0, %v1104
      %v1106 = vrot.slane %v1101, %v1105
      %v1112 = vunpack.c.l.b16 %v1097
      %v1113 = vunpack.c.l.b16 %v1098
      %v1114 = vunpack.c.l.b16 %v1099
      %v1115 = vunpack.c.l.b16 %v1100
      %v1116 = vpack.c.b16 %v1113, %v1112
      %v1117 = vpack.c.b16 %v1115, %v1114
      %v1121 = vsel %vm446, %v1096, 0
      %1123 = vmatprep.subr.bf16.mxu0 0
      %1124 = vmatpush1.bf16.msra.mxu0 %v1116
      %1125 = vmatprep.subr.bf16.mxu0 0
      %1126 = vmatpush1.bf16.msra.mxu0 %v1117
      %1127 = vmatprep.subr.bf16.mxu0 0
      %1128 = vmatpush1.bf16.msra.mxu0 0
      %1129 = vmatprep.subr.bf16.mxu0 0
      %1130 = vmatpush1.bf16.msra.mxu0 0
      %1131 = vmatprep.subr.bf16.mxu0 0
      %1132 = vmatpush1.bf16.msra.mxu0 0
      %1133 = vmatprep.subr.bf16.mxu0 0
      %1134 = vmatpush1.bf16.msra.mxu0 0
      %1135 = vmatprep.subr.bf16.mxu0 0
      %1136 = vmatpush1.bf16.msra.mxu0 0
      %1137 = vmatprep.subr.bf16.mxu0 0
      %1138 = vmatpush1.bf16.msra.mxu0 0
      %1139 = vmatprep.subr.bf16.mxu0 0
      %1140 = vmatpush1.bf16.msra.mxu0 0
      %1141 = vmatprep.subr.bf16.mxu0 0
      %1142 = vmatpush1.bf16.msra.mxu0 0
      %1143 = vmatprep.subr.bf16.mxu0 0
      %1144 = vmatpush1.bf16.msra.mxu0 0
      %1145 = vmatprep.subr.bf16.mxu0 0
      %1146 = vmatpush1.bf16.msra.mxu0 0
      %1147 = vmatprep.subr.bf16.mxu0 0
      %1148 = vmatpush1.bf16.msra.mxu0 0
      %1149 = vmatprep.subr.bf16.mxu0 0
      %1150 = vmatpush1.bf16.msra.mxu0 0
      %1151 = vmatprep.subr.bf16.mxu0 0
      %1152 = vmatpush1.bf16.msra.mxu0 0
      %1153 = vmatprep.subr.bf16.mxu0 0
      %1154 = vmatpush1.bf16.msra.mxu0 0
      %1155 = vmatprep.mubr.bf16.mxu0 0
      %1156 = vmatmul.mubr.bf16.gmra.mrb[0].mxu0 %v1121
      %v1157 = vpop.f32.mrb[0].mxu0
      %v1158 = vadd.f32 %v1106, %v1157
      %v1159 = vpop.f32.mrb[0].mxu0
      %v1160 = vpop.f32.mrb[0].mxu0
      %v1161 = vadd.f32 %v1106, %v1160
      %v1162 = vpop.f32.mrb[0].mxu0
      %1163 = vdwg.mxu0
      %v1164 = vadd.f32 %v442, %v1158
      %v1165 = vadd.f32 %v443, %v1161
      %v1166 = vld [vmem:[%s7] sm:$0x1]
      %v1167 = vld [vmem:[%s8] sm:$0x1]
      %v1168 = vsel %vm446, %v1164, 0.0
      %1169 = vadd.xlane.f32.xlu0 %v1168
      %v1170 = vpop.xlane.xlu0 %1169
      %v1171 = vsel %vm446, %v1165, 0.0
      %1172 = vadd.xlane.f32.xlu0 %v1171
      %v1173 = vpop.xlane.xlu0 %1172
      %v1174 = vmul.f32 %v1170, %v453
      %v1175 = vmul.f32 %v1173, %v453
      %v1176 = vsub.f32 %v1164, %v1174
      %v1177 = vsub.f32 %v1165, %v1175
      %v1178 = vmul.f32 %v1176, %v1176
      %v1179 = vmul.f32 %v1177, %v1177
      %v1180 = vsel %vm446, %v1178, 0.0
      %1181 = vadd.xlane.f32.xlu0 %v1180
      %v1182 = vpop.xlane.xlu0 %1181
      %v1183 = vsel %vm446, %v1179, 0.0
      %1184 = vadd.xlane.f32.xlu0 %v1183
      %v1185 = vpop.xlane.xlu0 %1184
      %v1186 = vmul.f32 %v1182, %v453
      %v1187 = vmul.f32 %v1185, %v453
      %v1188 = vadd.f32 %v1186, 1e-05
      %v1189 = vadd.f32 %v1187, 1e-05
      %v1190 = vrsqrt.pop %v1188
      %v1191 = vrsqrt.pop %v1189
      %v1192 = vmul.f32 %v1176, %v1190
      %v1193 = vmul.f32 %v1177, %v1191
      %v1195 = vlaneseq
      %v1196 = vshrl.u32 %v1195, 7
      %v1197 = vsub.s32 0, %v1196
      %v1198 = vrot.slane %v1166, %v1197
      %v1200 = vmul.f32 %v1192, %v1198
      %v1201 = vmul.f32 %v1193, %v1198
      %v1203 = vlaneseq
      %v1204 = vshrl.u32 %v1203, 7
      %v1205 = vsub.s32 0, %v1204
      %v1206 = vrot.slane %v1167, %v1205
      %v1208 = vadd.f32 %v1200, %v1206
      %v1209 = vadd.f32 %v1201, %v1206
      %v1210 = vpack.c.bf16 %v1209, %v1208
      %v1211 = vld [vmem:[%s9] sm:$0xf]
      %v1212 = vld [vmem:[%s9 + $0x4] sm:$0xf]
      %v1213 = vld [vmem:[%s9 + $0x8] sm:$0xf]
      %v1214 = vld [vmem:[%s9 + $0xc] sm:$0xf]
      %v1215 = vld [vmem:[%s10] sm:$0x1]
      %v1217 = vlaneseq
      %v1218 = vshrl.u32 %v1217, 7
      %v1219 = vsub.s32 0, %v1218
      %v1220 = vrot.slane %v1215, %v1219
      %v1226 = vunpack.c.l.b16 %v1211
      %v1227 = vunpack.c.l.b16 %v1212
      %v1228 = vunpack.c.l.b16 %v1213
      %v1229 = vunpack.c.l.b16 %v1214
      %v1230 = vpack.c.b16 %v1227, %v1226
      %v1231 = vpack.c.b16 %v1229, %v1228
      %v1235 = vsel %vm446, %v1210, 0
      %1237 = vmatprep.subr.bf16.mxu0 0
      %1238 = vmatpush1.bf16.msra.mxu0 %v1230
      %1239 = vmatprep.subr.bf16.mxu0 0
      %1240 = vmatpush1.bf16.msra.mxu0 %v1231
      %1241 = vmatprep.subr.bf16.mxu0 0
      %1242 = vmatpush1.bf16.msra.mxu0 0
      %1243 = vmatprep.subr.bf16.mxu0 0
      %1244 = vmatpush1.bf16.msra.mxu0 0
      %1245 = vmatprep.subr.bf16.mxu0 0
      %1246 = vmatpush1.bf16.msra.mxu0 0
      %1247 = vmatprep.subr.bf16.mxu0 0
      %1248 = vmatpush1.bf16.msra.mxu0 0
      %1249 = vmatprep.subr.bf16.mxu0 0
      %1250 = vmatpush1.bf16.msra.mxu0 0
      %1251 = vmatprep.subr.bf16.mxu0 0
      %1252 = vmatpush1.bf16.msra.mxu0 0
      %1253 = vmatprep.subr.bf16.mxu0 0
      %1254 = vmatpush1.bf16.msra.mxu0 0
      %1255 = vmatprep.subr.bf16.mxu0 0
      %1256 = vmatpush1.bf16.msra.mxu0 0
      %1257 = vmatprep.subr.bf16.mxu0 0
      %1258 = vmatpush1.bf16.msra.mxu0 0
      %1259 = vmatprep.subr.bf16.mxu0 0
      %1260 = vmatpush1.bf16.msra.mxu0 0
      %1261 = vmatprep.subr.bf16.mxu0 0
      %1262 = vmatpush1.bf16.msra.mxu0 0
      %1263 = vmatprep.subr.bf16.mxu0 0
      %1264 = vmatpush1.bf16.msra.mxu0 0
      %1265 = vmatprep.subr.bf16.mxu0 0
      %1266 = vmatpush1.bf16.msra.mxu0 0
      %1267 = vmatprep.subr.bf16.mxu0 0
      %1268 = vmatpush1.bf16.msra.mxu0 0
      %1269 = vmatprep.mubr.bf16.mxu0 0
      %1270 = vmatmul.mubr.bf16.gmra.mrb[0].mxu0 %v1235
      %v1271 = vpop.f32.mrb[0].mxu0
      %v1272 = vadd.f32 %v1220, %v1271
      %v1273 = vpop.f32.mrb[0].mxu0
      %v1274 = vpop.f32.mrb[0].mxu0
      %v1275 = vadd.f32 %v1220, %v1274
      %v1276 = vpop.f32.mrb[0].mxu0
      %1277 = vdwg.mxu0
      %v1278 = vmul.f32 %v1272, 0.5
      %v1279 = vmul.f32 %v1275, 0.5
      %v1280 = vmul.f32 %v1272, 0.044715
      %v1281 = vmul.f32 %v1275, 0.044715
      %v1282 = vmul.f32 %v1280, %v1272
      %v1283 = vmul.f32 %v1281, %v1275
      %v1284 = vmul.f32 %v1282, %v1272
      %v1285 = vmul.f32 %v1283, %v1275
      %v1286 = vadd.f32 %v1272, %v1284
      %v1287 = vadd.f32 %v1275, %v1285
      %v1288 = vmul.f32 %v1286, 0.7978846
      %v1289 = vmul.f32 %v1287, 0.7978846
      %v1290 = vtanh.pop %v1288
      %v1291 = vtanh.pop %v1289
      %v1292 = vadd.f32 %v1290, 1.0
      %v1293 = vadd.f32 %v1291, 1.0
      %v1294 = vmul.f32 %v1278, %v1292
      %v1295 = vmul.f32 %v1279, %v1293
      %v1296 = vpack.c.bf16 %v1295, %v1294
      %v1297 = vld [vmem:[%s11] sm:$0xf]
      %v1298 = vld [vmem:[%s11 + $0x4] sm:$0xf]
      %v1299 = vld [vmem:[%s11 + $0x8] sm:$0xf]
      %v1300 = vld [vmem:[%s11 + $0xc] sm:$0xf]
      %v1301 = vld [vmem:[%s11 + $0x10] sm:$0xf]
      %v1302 = vld [vmem:[%s11 + $0x14] sm:$0xf]
      %v1303 = vld [vmem:[%s11 + $0x18] sm:$0xf]
      %v1304 = vld [vmem:[%s11 + $0x1c] sm:$0xf]
      %v1305 = vld [vmem:[%s11 + $0x20] sm:$0xf]
      %v1306 = vld [vmem:[%s11 + $0x24] sm:$0xf]
      %v1307 = vld [vmem:[%s11 + $0x28] sm:$0xf]
      %v1308 = vld [vmem:[%s11 + $0x2c] sm:$0xf]
      %v1309 = vld [vmem:[%s11 + $0x30] sm:$0xf]
      %v1310 = vld [vmem:[%s11 + $0x34] sm:$0xf]
      %v1311 = vld [vmem:[%s11 + $0x38] sm:$0xf]
      %v1312 = vld [vmem:[%s11 + $0x3c] sm:$0xf]
      %v1313 = vld [vmem:[%s12] sm:$0x1]
      %v1315 = vlaneseq
      %v1316 = vshrl.u32 %v1315, 7
      %v1317 = vsub.s32 0, %v1316
      %v1318 = vrot.slane %v1313, %v1317
      %v1336 = vunpack.c.l.b16 %v1297
      %v1337 = vunpack.c.l.b16 %v1298
      %v1338 = vunpack.c.l.b16 %v1299
      %v1339 = vunpack.c.l.b16 %v1300
      %v1340 = vunpack.c.l.b16 %v1301
      %v1341 = vunpack.c.l.b16 %v1302
      %v1342 = vunpack.c.l.b16 %v1303
      %v1343 = vunpack.c.l.b16 %v1304
      %v1344 = vunpack.c.l.b16 %v1305
      %v1345 = vunpack.c.l.b16 %v1306
      %v1346 = vunpack.c.l.b16 %v1307
      %v1347 = vunpack.c.l.b16 %v1308
      %v1348 = vunpack.c.l.b16 %v1309
      %v1349 = vunpack.c.l.b16 %v1310
      %v1350 = vunpack.c.l.b16 %v1311
      %v1351 = vunpack.c.l.b16 %v1312
      %v1352 = vpack.c.b16 %v1337, %v1336
      %v1353 = vpack.c.b16 %v1339, %v1338
      %v1354 = vpack.c.b16 %v1341, %v1340
      %v1355 = vpack.c.b16 %v1343, %v1342
      %v1356 = vpack.c.b16 %v1345, %v1344
      %v1357 = vpack.c.b16 %v1347, %v1346
      %v1358 = vpack.c.b16 %v1349, %v1348
      %v1359 = vpack.c.b16 %v1351, %v1350
      %1368 = vmatprep.subr.bf16.mxu0 0
      %1369 = vmatpush1.bf16.msra.mxu0 %v1352
      %1370 = vmatprep.subr.bf16.mxu0 0
      %1371 = vmatpush1.bf16.msra.mxu0 %v1353
      %1372 = vmatprep.subr.bf16.mxu0 0
      %1373 = vmatpush1.bf16.msra.mxu0 %v1354
      %1374 = vmatprep.subr.bf16.mxu0 0
      %1375 = vmatpush1.bf16.msra.mxu0 %v1355
      %1376 = vmatprep.subr.bf16.mxu0 0
      %1377 = vmatpush1.bf16.msra.mxu0 %v1356
      %1378 = vmatprep.subr.bf16.mxu0 0
      %1379 = vmatpush1.bf16.msra.mxu0 %v1357
      %1380 = vmatprep.subr.bf16.mxu0 0
      %1381 = vmatpush1.bf16.msra.mxu0 %v1358
      %1382 = vmatprep.subr.bf16.mxu0 0
      %1383 = vmatpush1.bf16.msra.mxu0 %v1359
      %1384 = vmatprep.subr.bf16.mxu0 0
      %1385 = vmatpush1.bf16.msra.mxu0 0
      %1386 = vmatprep.subr.bf16.mxu0 0
      %1387 = vmatpush1.bf16.msra.mxu0 0
      %1388 = vmatprep.subr.bf16.mxu0 0
      %1389 = vmatpush1.bf16.msra.mxu0 0
      %1390 = vmatprep.subr.bf16.mxu0 0
      %1391 = vmatpush1.bf16.msra.mxu0 0
      %1392 = vmatprep.subr.bf16.mxu0 0
      %1393 = vmatpush1.bf16.msra.mxu0 0
      %1394 = vmatprep.subr.bf16.mxu0 0
      %1395 = vmatpush1.bf16.msra.mxu0 0
      %1396 = vmatprep.subr.bf16.mxu0 0
      %1397 = vmatpush1.bf16.msra.mxu0 0
      %1398 = vmatprep.subr.bf16.mxu0 0
      %1399 = vmatpush1.bf16.msra.mxu0 0
      %1400 = vmatprep.mubr.bf16.mxu0 0
      %1401 = vmatmul.mubr.bf16.gmra.mrb[0].mxu0 %v1296
      %v1402 = vpop.f32.mrb[0].mxu0
      %v1403 = vadd.f32 %v1318, %v1402
      %v1404 = vpop.f32.mrb[0].mxu0
      %v1405 = vpop.f32.mrb[0].mxu0
      %v1406 = vadd.f32 %v1318, %v1405
      %v1407 = vpop.f32.mrb[0].mxu0
      %1408 = vdwg.mxu0
      %v1409 = vadd.f32 %v1164, %v1403
      %v1410 = vadd.f32 %v1165, %v1406
      %1411 = vst.msk [vmem:[%s440] sm:$0xff] %vm446, %v1409
      %1412 = vst.msk [vmem:[%s440 + $0x8] sm:$0xff] %vm446, %v1410
      %p1413 = scmp.lt.s32.totalorder %s24, 1
      %s1414 = scalar_select %p1413, %s24, 1
      %s1415 = smul.addr %s1414, 2
      %s1416 = smul.addr %s1415, 8
      %s1417 = scalar_lea.vmem %s13, %s1416
      // Predicated region
      $region73: #{transformer_forward.5} parent=71 // pred_check
        %p1418 = pneg %p320
      $region74: #{transformer_forward.5} parent=71 // pred_check_branch
        %1420 = sbr.rel (%p1418) target = $region76
      $region75: #{transformer_forward.5} parent=71 // pred_region
        _
      $region76: #{transformer_forward.5} parent=71 // pred_fallthru
        _
    $region72: #{transformer_forward.5} parent=5 // pred_fallthru
      _
    %p1421 = scmp.le.s32.totalorder 2, %s19
    // Predicated region
    $region77: #{transformer_forward.5} parent=5 // pred_check
      %p1422 = pneg %p1421
    $region78: #{transformer_forward.5} parent=5 // pred_check_branch
      %1424 = sbr.rel (%p1422) target = $region80
    $region79: #{transformer_forward.5} parent=5 // pred_region
      %s1425 = ssub.s32 %s19, 2
      // Predicated region
      $region81: #{transformer_forward.5} parent=79 // pred_check
        %p1426 = pneg %p326
      $region82: #{transformer_forward.5} parent=79 // pred_check_branch
        %1428 = sbr.rel (%p1426) target = $region84
      $region83: #{transformer_forward.5} parent=79 // pred_region
        %p1429 = scmp.lt.s32.totalorder %s25, 1
        %s1430 = scalar_select %p1429, %s25, 1
        %s1431 = smul.addr %s1430, 2
        %s1432 = smul.addr %s1431, 8
        %s1433 = scalar_lea.vmem %s13, %s1432
      $region84: #{transformer_forward.5} parent=79 // pred_fallthru
        _
    $region80: #{transformer_forward.5} parent=5 // pred_fallthru
      _
  $region6: #{transformer_forward.5} parent=0 // loop_footer
    %s23 = sadd.s32 1, %s19
  $region7: #{transformer_forward.5} parent=0 // loop_footer_branch
    %18 = sbr.rel target = $region3
  $region8: #{transformer_forward.5} parent=0 // loop_exit
    _

</llo_original>
